<compile_context>
chip_gen: v6e
topology: v6e:2x2x1
jax: 0.10.0
libtpu: 0.0.40
codegen_flags: <defaults>
</compile_context>

<pallas_src>
import functools

import jax
import jax.numpy as jnp
from jax.experimental import pallas as pl
from jax.experimental.pallas import tpu as pltpu

_NEG_INF = -1e30  # large finite negative; avoids inf-arithmetic NaN corner cases


def _mha_kernel(q_ref, k_ref, v_ref, o_ref, m_ref, l_ref, acc_ref,
                *, heads, head_dim, scale, nk):
    """One (batch, q-tile, kv-tile) step of flash-style multi-head attention.

    q_ref:   (1, tq, H*D)    k_ref/v_ref: (1, tk, H*D)    o_ref: (1, tq, H*D)
    m_ref:   (H, tq, 1) f32  running max per head/query row
    l_ref:   (tq, H*D) f32   running softmax denom, broadcast over each head's D cols
    acc_ref: (tq, H*D) f32   running un-normalized output
    """
    ki = pl.program_id(2)
    nk_steps = pl.num_programs(2)
    tq = q_ref.shape[1]
    tk = k_ref.shape[1]

    @pl.when(ki == 0)
    def _init():
        m_ref[...] = jnp.full_like(m_ref, _NEG_INF)
        l_ref[...] = jnp.zeros_like(l_ref)
        acc_ref[...] = jnp.zeros_like(acc_ref)

    # Fold the softmax scale into Q once per tile (O(tq*H*D) instead of O(tq*tk*H)).
    q_tile = q_ref[0] * scale            # (tq, H*D), native dtype
    k_tile = k_ref[0]                    # (tk, H*D)
    v_tile = v_ref[0]                    # (tk, H*D)

    # Tail-KV mask — compiled in only if Nk is not a multiple of the KV tile.
    need_mask = (nk % tk) != 0
    if need_mask:
        kpos = ki * tk + jax.lax.broadcasted_iota(jnp.int32, (1, tk), 1)
        kv_mask = kpos < nk              # (1, tk), broadcasts over query rows

    for h in range(heads):
        cols = slice(h * head_dim, (h + 1) * head_dim)
        qh = q_tile[:, cols]             # (tq, D)
        kh = k_tile[:, cols]             # (tk, D)
        vh = v_tile[:, cols]             # (tk, D)

        # scores (tq, tk), f32 accumulation on the MXU.
        s = jax.lax.dot_general(
            qh, kh,
            dimension_numbers=(((1,), (1,)), ((), ())),
            preferred_element_type=jnp.float32,
        )
        if need_mask:
            s = jnp.where(kv_mask, s, _NEG_INF)

        m_prev = m_ref[h]                                    # (tq, 1)
        m_new = jnp.maximum(m_prev, jnp.max(s, axis=-1, keepdims=True))
        alpha = jnp.exp(m_prev - m_new)                      # (tq, 1)
        p = jnp.exp(s - m_new)                               # (tq, tk) f32
        m_ref[h] = m_new

        # Denominator, kept broadcast across this head's D output columns so
        # the final normalization is one lane-dense multiply.
        l_ref[:, cols] = alpha * l_ref[:, cols] + jnp.sum(p, axis=-1, keepdims=True)

        pv = jax.lax.dot_general(
            p.astype(v_tile.dtype), vh,
            dimension_numbers=(((1,), (0,)), ((), ())),
            preferred_element_type=jnp.float32,
        )                                                    # (tq, D)
        acc_ref[:, cols] = alpha * acc_ref[:, cols] + pv

    @pl.when(ki == nk_steps - 1)
    def _finalize():
        # Deferred normalization: reciprocal on the EUP, one lane-dense store.
        inv_l = pl.reciprocal(l_ref[...], approx=True)
        o_ref[0] = (acc_ref[...] * inv_l).astype(o_ref.dtype)


def _pick_tile(n, target):
    """Largest sequence tile <= target that divides n and satisfies TPU tiling."""
    if n <= target:
        return n                          # full-dim block is always legal
    for t in range(target, 7, -8):        # multiples of 8 only
        if n % t == 0:
            return t
    return n                              # no clean divisor: use full extent


def multi_head_attention(Q, K, V, heads, *, q_tile=256, kv_tile=256):
    """Q, K, V: (B, N, heads*D) arrays. Returns (B, Nq, heads*D)."""
    B, Nq, HD = Q.shape
    _, Nk, _ = K.shape
    D = HD // heads
    scale = float(D) ** (-0.5)            # == (dim/heads) ** -0.5, matches PyTorch

    tq = _pick_tile(Nq, q_tile)
    tk = _pick_tile(Nk, kv_tile)
    grid = (B, pl.cdiv(Nq, tq), pl.cdiv(Nk, tk))

    # VMEM budget estimate: double-buffered blocks + scratch + score working set.
    itemsize = jnp.dtype(Q.dtype).itemsize
    block_bytes = 2 * (2 * tq * HD + 2 * tk * HD) * itemsize
    scratch_bytes = (2 * tq * HD + heads * max(tq, 8) * 128) * 4
    work_bytes = 2 * heads * tq * max(tk, 128) * 4
    est = block_bytes + scratch_bytes + work_bytes
    vmem_limit = int(min(max(2 * est, 32 * 1024 * 1024), 48 * 1024 * 1024))

    cost = pl.CostEstimate(
        flops=4 * B * heads * Nq * Nk * D,
        transcendentals=B * heads * Nq * Nk,
        bytes_accessed=(2 * B * Nq * HD + 2 * B * Nk * HD) * itemsize,
    )

    kernel = functools.partial(
        _mha_kernel, heads=heads, head_dim=D, scale=scale, nk=Nk)

    out = pl.pallas_call(
        kernel,
        out_shape=jax.ShapeDtypeStruct((B, Nq, HD), Q.dtype),
        grid_spec=pltpu.PrefetchScalarGridSpec(
            num_scalar_prefetch=0,
            grid=grid,
            in_specs=[
                pl.BlockSpec((1, tq, HD), lambda b, qi, ki: (b, qi, 0)),
                pl.BlockSpec((1, tk, HD), lambda b, qi, ki: (b, ki, 0)),
                pl.BlockSpec((1, tk, HD), lambda b, qi, ki: (b, ki, 0)),
            ],
            out_specs=pl.BlockSpec((1, tq, HD), lambda b, qi, ki: (b, qi, 0)),
            scratch_shapes=[
                pltpu.VMEM((heads, tq, 1), jnp.float32),   # m: running max
                pltpu.VMEM((tq, HD), jnp.float32),         # l: running denom
                pltpu.VMEM((tq, HD), jnp.float32),         # acc: running output
            ],
        ),
        compiler_params=pltpu.CompilerParams(
            dimension_semantics=("parallel", "parallel", "arbitrary"),
            vmem_limit_bytes=vmem_limit,
        ),
        cost_estimate=cost,
    )(Q, K, V)
    return out


def _reference(Q, K, V, heads):
    B, Nq, HD = Q.shape
    D = HD // heads
    scale = (HD / heads) ** (-0.5)
    q = Q.reshape(B, Nq, heads, D).transpose(0, 2, 1, 3)
    k = K.reshape(B, K.shape[1], heads, D).transpose(0, 2, 1, 3)
    v = V.reshape(B, V.shape[1], heads, D).transpose(0, 2, 1, 3)
    dots = jnp.einsum("bhid,bhjd->bhij", q, k) * scale
    attn = jax.nn.softmax(dots, axis=-1)
    out = jnp.einsum("bhij,bhjd->bhid", attn, v)
    return out.transpose(0, 2, 1, 3).reshape(B, Nq, heads * D)


if __name__ == "__main__":
    key = jax.random.PRNGKey(0)
    kq, kk, kv = jax.random.split(key, 3)

    B, seq, heads, dim = 2, 8, 4, 32  # dim = heads * head_dim, head_dim = 8
    Q = jax.random.normal(kq, (B, seq, dim), dtype=jnp.float32)
    K = jax.random.normal(kk, (B, seq, dim), dtype=jnp.float32)
    V = jax.random.normal(kv, (B, seq, dim), dtype=jnp.float32)

    out = multi_head_attention(Q, K, V, heads)
    jax.block_until_ready(out)

    ref = _reference(Q, K, V, heads)
    assert out.shape == (B, seq, dim)
    # Tolerance accounts for the approximate (EUP) reciprocal in normalization.
    assert jnp.allclose(out, ref, atol=2e-3, rtol=2e-3), "mismatch vs reference"

    print("KERNEL_OK")
</pallas_src>

<mosaic_0001>
module attributes {stable_mosaic.version = 11 : i64} {
  func.func @_mha_kernel(%arg0: i32, %arg1: i32, %arg2: i32, %arg3: memref<1x8x32xf32, #tpu.memory_space<vmem>>, %arg4: memref<1x8x32xf32, #tpu.memory_space<vmem>>, %arg5: memref<1x8x32xf32, #tpu.memory_space<vmem>>, %arg6: memref<1x8x32xf32, #tpu.memory_space<vmem>>, %arg7: memref<4x8x1xf32, #tpu.memory_space<vmem>>, %arg8: memref<8x32xf32, #tpu.memory_space<vmem>>, %arg9: memref<8x32xf32, #tpu.memory_space<vmem>>) attributes {dimension_semantics = [#tpu.dimension_semantics<parallel>, #tpu.dimension_semantics<parallel>, #tpu.dimension_semantics<arbitrary>], iteration_bounds = array<i64: 2, 1, 1>, scalar_prefetch = 0 : i64, scratch_operands = 3 : i64, tpu.core_type = #tpu.core_type<tc>, window_params = [{transform_indices = @transform_0, window_bounds = array<i64: 1, 8, 32>}, {transform_indices = @transform_1, window_bounds = array<i64: 1, 8, 32>}, {transform_indices = @transform_2, window_bounds = array<i64: 1, 8, 32>}, {transform_indices = @transform_3, window_bounds = array<i64: 1, 8, 32>}]} {
    %c0_i32 = arith.constant 0 : i32
    %0 = arith.cmpi eq, %arg2, %c0_i32 : i32
    %1 = arith.extui %0 : i1 to i32
    %c0_i32_0 = arith.constant 0 : i32
    %2 = arith.cmpi ne, %1, %c0_i32_0 : i32
    scf.if %2 {
      %cst_77 = arith.constant -1.000000e+30 : f32
      %138 = vector.broadcast %cst_77 : f32 to vector<4x8x1xf32>
      %c0_78 = arith.constant 0 : index
      %c0_79 = arith.constant 0 : index
      %c0_80 = arith.constant 0 : index
      %139 = vector.load %arg7[%c0_78, %c0_79, %c0_80] : memref<4x8x1xf32, #tpu.memory_space<vmem>>, vector<4x8x1xf32>
      tpu.vector_store %arg7[%c0_78, %c0_79, %c0_80], %138 {strides = array<i32>} : memref<4x8x1xf32, #tpu.memory_space<vmem>>, vector<4x8x1xf32>,
      %cst_81 = arith.constant 0.000000e+00 : f32
      %140 = vector.broadcast %cst_81 : f32 to vector<8x32xf32>
      %c0_82 = arith.constant 0 : index
      %c0_83 = arith.constant 0 : index
      %141 = vector.load %arg8[%c0_82, %c0_83] : memref<8x32xf32, #tpu.memory_space<vmem>>, vector<8x32xf32>
      tpu.vector_store %arg8[%c0_82, %c0_83], %140 {strides = array<i32>} : memref<8x32xf32, #tpu.memory_space<vmem>>, vector<8x32xf32>,
      %cst_84 = arith.constant 0.000000e+00 : f32
      %142 = vector.broadcast %cst_84 : f32 to vector<8x32xf32>
      %c0_85 = arith.constant 0 : index
      %c0_86 = arith.constant 0 : index
      %143 = vector.load %arg9[%c0_85, %c0_86] : memref<8x32xf32, #tpu.memory_space<vmem>>, vector<8x32xf32>
      tpu.vector_store %arg9[%c0_85, %c0_86], %142 {strides = array<i32>} : memref<8x32xf32, #tpu.memory_space<vmem>>, vector<8x32xf32>,
    } else {
    }
    %c0 = arith.constant 0 : index
    %c0_1 = arith.constant 0 : index
    %c0_2 = arith.constant 0 : index
    %3 = vector.load %arg3[%c0, %c0_1, %c0_2] : memref<1x8x32xf32, #tpu.memory_space<vmem>>, vector<1x8x32xf32>
    %4 = vector.shape_cast %3 : vector<1x8x32xf32> to vector<8x32xf32>
    %cst = arith.constant 0.353553385 : f32
    %5 = vector.broadcast %cst : f32 to vector<8x32xf32>
    %6 = arith.mulf %4, %5 : vector<8x32xf32>
    %c0_3 = arith.constant 0 : index
    %c0_4 = arith.constant 0 : index
    %c0_5 = arith.constant 0 : index
    %7 = vector.load %arg4[%c0_3, %c0_4, %c0_5] : memref<1x8x32xf32, #tpu.memory_space<vmem>>, vector<1x8x32xf32>
    %8 = vector.shape_cast %7 : vector<1x8x32xf32> to vector<8x32xf32>
    %c0_6 = arith.constant 0 : index
    %c0_7 = arith.constant 0 : index
    %c0_8 = arith.constant 0 : index
    %9 = vector.load %arg5[%c0_6, %c0_7, %c0_8] : memref<1x8x32xf32, #tpu.memory_space<vmem>>, vector<1x8x32xf32>
    %10 = vector.shape_cast %9 : vector<1x8x32xf32> to vector<8x32xf32>
    %11 = vector.extract_strided_slice %6 {offsets = [0, 0], sizes = [8, 8], strides = [1, 1]} : vector<8x32xf32> to vector<8x8xf32>
    %12 = vector.extract_strided_slice %8 {offsets = [0, 0], sizes = [8, 8], strides = [1, 1]} : vector<8x32xf32> to vector<8x8xf32>
    %13 = vector.extract_strided_slice %10 {offsets = [0, 0], sizes = [8, 8], strides = [1, 1]} : vector<8x32xf32> to vector<8x8xf32>
    %cst_9 = arith.constant dense<0.000000e+00> : vector<8x8xf32>
    %14 = tpu.matmul %11, %12, %cst_9 {dimension_numbers = #tpu.dot_dimension_numbers<[1], [1], [0], [0], [0, 0, 1, 0], [], []>} : vector<8x8xf32>, vector<8x8xf32>, vector<8x8xf32> -> vector<8x8xf32>
    %c0_10 = arith.constant 0 : index
    %c0_11 = arith.constant 0 : index
    %c0_12 = arith.constant 0 : index
    %15 = vector.load %arg7[%c0_10, %c0_11, %c0_12] : memref<4x8x1xf32, #tpu.memory_space<vmem>>, vector<1x8x1xf32>
    %16 = vector.shape_cast %15 : vector<1x8x1xf32> to vector<8x1xf32>
    %cst_13 = arith.constant dense<0xFF800000> : vector<8xf32>
    %17 = vector.multi_reduction <maximumf>, %14, %cst_13 [1] : vector<8x8xf32> to vector<8xf32>
    %18 = vector.shape_cast %17 : vector<8xf32> to vector<8x1xf32>
    %19 = arith.maximumf %16, %18 : vector<8x1xf32>
    %20 = arith.subf %16, %19 : vector<8x1xf32>
    %21 = math.exp %20 : vector<8x1xf32>
    %22 = vector.broadcast %19 : vector<8x1xf32> to vector<8x8xf32>
    %23 = arith.subf %14, %22 : vector<8x8xf32>
    %24 = math.exp %23 : vector<8x8xf32>
    %c0_14 = arith.constant 0 : index
    %c0_15 = arith.constant 0 : index
    %c0_16 = arith.constant 0 : index
    %25 = vector.load %arg7[%c0_14, %c0_15, %c0_16] : memref<4x8x1xf32, #tpu.memory_space<vmem>>, vector<1x8x1xf32>
    %26 = vector.shape_cast %25 : vector<1x8x1xf32> to vector<8x1xf32>
    %27 = vector.shape_cast %19 : vector<8x1xf32> to vector<1x8x1xf32>
    tpu.vector_store %arg7[%c0_14, %c0_15, %c0_16], %27 {strides = array<i32>} : memref<4x8x1xf32, #tpu.memory_space<vmem>>, vector<1x8x1xf32>,
    %c0_17 = arith.constant 0 : index
    %c0_18 = arith.constant 0 : index
    %28 = vector.load %arg8[%c0_17, %c0_18] : memref<8x32xf32, #tpu.memory_space<vmem>>, vector<8x8xf32>
    %29 = vector.broadcast %21 : vector<8x1xf32> to vector<8x8xf32>
    %30 = arith.mulf %29, %28 : vector<8x8xf32>
    %cst_19 = arith.constant dense<0.000000e+00> : vector<8xf32>
    %31 = vector.multi_reduction <add>, %24, %cst_19 [1] : vector<8x8xf32> to vector<8xf32>
    %32 = vector.shape_cast %31 : vector<8xf32> to vector<8x1xf32>
    %33 = vector.broadcast %32 : vector<8x1xf32> to vector<8x8xf32>
    %34 = arith.addf %30, %33 : vector<8x8xf32>
    %c0_20 = arith.constant 0 : index
    %c0_21 = arith.constant 0 : index
    %35 = vector.load %arg8[%c0_20, %c0_21] : memref<8x32xf32, #tpu.memory_space<vmem>>, vector<8x8xf32>
    tpu.vector_store %arg8[%c0_20, %c0_21], %34 {strides = array<i32>} : memref<8x32xf32, #tpu.memory_space<vmem>>, vector<8x8xf32>,
    %cst_22 = arith.constant dense<0.000000e+00> : vector<8x8xf32>
    %36 = tpu.matmul %24, %13, %cst_22 {dimension_numbers = #tpu.dot_dimension_numbers<[1], [0], [0], [1], [0, 0, 1, 1], [], []>} : vector<8x8xf32>, vector<8x8xf32>, vector<8x8xf32> -> vector<8x8xf32>
    %c0_23 = arith.constant 0 : index
    %c0_24 = arith.constant 0 : index
    %37 = vector.load %arg9[%c0_23, %c0_24] : memref<8x32xf32, #tpu.memory_space<vmem>>, vector<8x8xf32>
    %38 = vector.broadcast %21 : vector<8x1xf32> to vector<8x8xf32>
    %39 = arith.mulf %38, %37 : vector<8x8xf32>
    %40 = arith.addf %39, %36 : vector<8x8xf32>
    %c0_25 = arith.constant 0 : index
    %c0_26 = arith.constant 0 : index
    %41 = vector.load %arg9[%c0_25, %c0_26] : memref<8x32xf32, #tpu.memory_space<vmem>>, vector<8x8xf32>
    tpu.vector_store %arg9[%c0_25, %c0_26], %40 {strides = array<i32>} : memref<8x32xf32, #tpu.memory_space<vmem>>, vector<8x8xf32>,
    %42 = vector.extract_strided_slice %6 {offsets = [0, 8], sizes = [8, 8], strides = [1, 1]} : vector<8x32xf32> to vector<8x8xf32>
    %43 = vector.extract_strided_slice %8 {offsets = [0, 8], sizes = [8, 8], strides = [1, 1]} : vector<8x32xf32> to vector<8x8xf32>
    %44 = vector.extract_strided_slice %10 {offsets = [0, 8], sizes = [8, 8], strides = [1, 1]} : vector<8x32xf32> to vector<8x8xf32>
    %cst_27 = arith.constant dense<0.000000e+00> : vector<8x8xf32>
    %45 = tpu.matmul %42, %43, %cst_27 {dimension_numbers = #tpu.dot_dimension_numbers<[1], [1], [0], [0], [0, 0, 1, 0], [], []>} : vector<8x8xf32>, vector<8x8xf32>, vector<8x8xf32> -> vector<8x8xf32>
    %c1 = arith.constant 1 : index
    %c0_28 = arith.constant 0 : index
    %c0_29 = arith.constant 0 : index
    %46 = vector.load %arg7[%c1, %c0_28, %c0_29] : memref<4x8x1xf32, #tpu.memory_space<vmem>>, vector<1x8x1xf32>
    %47 = vector.shape_cast %46 : vector<1x8x1xf32> to vector<8x1xf32>
    %cst_30 = arith.constant dense<0xFF800000> : vector<8xf32>
    %48 = vector.multi_reduction <maximumf>, %45, %cst_30 [1] : vector<8x8xf32> to vector<8xf32>
    %49 = vector.shape_cast %48 : vector<8xf32> to vector<8x1xf32>
    %50 = arith.maximumf %47, %49 : vector<8x1xf32>
    %51 = arith.subf %47, %50 : vector<8x1xf32>
    %52 = math.exp %51 : vector<8x1xf32>
    %53 = vector.broadcast %50 : vector<8x1xf32> to vector<8x8xf32>
    %54 = arith.subf %45, %53 : vector<8x8xf32>
    %55 = math.exp %54 : vector<8x8xf32>
    %c1_31 = arith.constant 1 : index
    %c0_32 = arith.constant 0 : index
    %c0_33 = arith.constant 0 : index
    %56 = vector.load %arg7[%c1_31, %c0_32, %c0_33] : memref<4x8x1xf32, #tpu.memory_space<vmem>>, vector<1x8x1xf32>
    %57 = vector.shape_cast %56 : vector<1x8x1xf32> to vector<8x1xf32>
    %58 = vector.shape_cast %50 : vector<8x1xf32> to vector<1x8x1xf32>
    tpu.vector_store %arg7[%c1_31, %c0_32, %c0_33], %58 {strides = array<i32>} : memref<4x8x1xf32, #tpu.memory_space<vmem>>, vector<1x8x1xf32>,
    %c0_34 = arith.constant 0 : index
    %c8 = arith.constant 8 : index
    %59 = vector.load %arg8[%c0_34, %c8] : memref<8x32xf32, #tpu.memory_space<vmem>>, vector<8x8xf32>
    %60 = vector.broadcast %52 : vector<8x1xf32> to vector<8x8xf32>
    %61 = arith.mulf %60, %59 : vector<8x8xf32>
    %cst_35 = arith.constant dense<0.000000e+00> : vector<8xf32>
    %62 = vector.multi_reduction <add>, %55, %cst_35 [1] : vector<8x8xf32> to vector<8xf32>
    %63 = vector.shape_cast %62 : vector<8xf32> to vector<8x1xf32>
    %64 = vector.broadcast %63 : vector<8x1xf32> to vector<8x8xf32>
    %65 = arith.addf %61, %64 : vector<8x8xf32>
    %c0_36 = arith.constant 0 : index
    %c8_37 = arith.constant 8 : index
    %66 = vector.load %arg8[%c0_36, %c8_37] : memref<8x32xf32, #tpu.memory_space<vmem>>, vector<8x8xf32>
    tpu.vector_store %arg8[%c0_36, %c8_37], %65 {strides = array<i32>} : memref<8x32xf32, #tpu.memory_space<vmem>>, vector<8x8xf32>,
    %cst_38 = arith.constant dense<0.000000e+00> : vector<8x8xf32>
    %67 = tpu.matmul %55, %44, %cst_38 {dimension_numbers = #tpu.dot_dimension_numbers<[1], [0], [0], [1], [0, 0, 1, 1], [], []>} : vector<8x8xf32>, vector<8x8xf32>, vector<8x8xf32> -> vector<8x8xf32>
    %c0_39 = arith.constant 0 : index
    %c8_40 = arith.constant 8 : index
    %68 = vector.load %arg9[%c0_39, %c8_40] : memref<8x32xf32, #tpu.memory_space<vmem>>, vector<8x8xf32>
    %69 = vector.broadcast %52 : vector<8x1xf32> to vector<8x8xf32>
    %70 = arith.mulf %69, %68 : vector<8x8xf32>
    %71 = arith.addf %70, %67 : vector<8x8xf32>
    %c0_41 = arith.constant 0 : index
    %c8_42 = arith.constant 8 : index
    %72 = vector.load %arg9[%c0_41, %c8_42] : memref<8x32xf32, #tpu.memory_space<vmem>>, vector<8x8xf32>
    tpu.vector_store %arg9[%c0_41, %c8_42], %71 {strides = array<i32>} : memref<8x32xf32, #tpu.memory_space<vmem>>, vector<8x8xf32>,
    %73 = vector.extract_strided_slice %6 {offsets = [0, 16], sizes = [8, 8], strides = [1, 1]} : vector<8x32xf32> to vector<8x8xf32>
    %74 = vector.extract_strided_slice %8 {offsets = [0, 16], sizes = [8, 8], strides = [1, 1]} : vector<8x32xf32> to vector<8x8xf32>
    %75 = vector.extract_strided_slice %10 {offsets = [0, 16], sizes = [8, 8], strides = [1, 1]} : vector<8x32xf32> to vector<8x8xf32>
    %cst_43 = arith.constant dense<0.000000e+00> : vector<8x8xf32>
    %76 = tpu.matmul %73, %74, %cst_43 {dimension_numbers = #tpu.dot_dimension_numbers<[1], [1], [0], [0], [0, 0, 1, 0], [], []>} : vector<8x8xf32>, vector<8x8xf32>, vector<8x8xf32> -> vector<8x8xf32>
    %c2 = arith.constant 2 : index
    %c0_44 = arith.constant 0 : index
    %c0_45 = arith.constant 0 : index
    %77 = vector.load %arg7[%c2, %c0_44, %c0_45] : memref<4x8x1xf32, #tpu.memory_space<vmem>>, vector<1x8x1xf32>
    %78 = vector.shape_cast %77 : vector<1x8x1xf32> to vector<8x1xf32>
    %cst_46 = arith.constant dense<0xFF800000> : vector<8xf32>
    %79 = vector.multi_reduction <maximumf>, %76, %cst_46 [1] : vector<8x8xf32> to vector<8xf32>
    %80 = vector.shape_cast %79 : vector<8xf32> to vector<8x1xf32>
    %81 = arith.maximumf %78, %80 : vector<8x1xf32>
    %82 = arith.subf %78, %81 : vector<8x1xf32>
    %83 = math.exp %82 : vector<8x1xf32>
    %84 = vector.broadcast %81 : vector<8x1xf32> to vector<8x8xf32>
    %85 = arith.subf %76, %84 : vector<8x8xf32>
    %86 = math.exp %85 : vector<8x8xf32>
    %c2_47 = arith.constant 2 : index
    %c0_48 = arith.constant 0 : index
    %c0_49 = arith.constant 0 : index
    %87 = vector.load %arg7[%c2_47, %c0_48, %c0_49] : memref<4x8x1xf32, #tpu.memory_space<vmem>>, vector<1x8x1xf32>
    %88 = vector.shape_cast %87 : vector<1x8x1xf32> to vector<8x1xf32>
    %89 = vector.shape_cast %81 : vector<8x1xf32> to vector<1x8x1xf32>
    tpu.vector_store %arg7[%c2_47, %c0_48, %c0_49], %89 {strides = array<i32>} : memref<4x8x1xf32, #tpu.memory_space<vmem>>, vector<1x8x1xf32>,
    %c0_50 = arith.constant 0 : index
    %c16 = arith.constant 16 : index
    %90 = vector.load %arg8[%c0_50, %c16] : memref<8x32xf32, #tpu.memory_space<vmem>>, vector<8x8xf32>
    %91 = vector.broadcast %83 : vector<8x1xf32> to vector<8x8xf32>
    %92 = arith.mulf %91, %90 : vector<8x8xf32>
    %cst_51 = arith.constant dense<0.000000e+00> : vector<8xf32>
    %93 = vector.multi_reduction <add>, %86, %cst_51 [1] : vector<8x8xf32> to vector<8xf32>
    %94 = vector.shape_cast %93 : vector<8xf32> to vector<8x1xf32>
    %95 = vector.broadcast %94 : vector<8x1xf32> to vector<8x8xf32>
    %96 = arith.addf %92, %95 : vector<8x8xf32>
    %c0_52 = arith.constant 0 : index
    %c16_53 = arith.constant 16 : index
    %97 = vector.load %arg8[%c0_52, %c16_53] : memref<8x32xf32, #tpu.memory_space<vmem>>, vector<8x8xf32>
    tpu.vector_store %arg8[%c0_52, %c16_53], %96 {strides = array<i32>} : memref<8x32xf32, #tpu.memory_space<vmem>>, vector<8x8xf32>,
    %cst_54 = arith.constant dense<0.000000e+00> : vector<8x8xf32>
    %98 = tpu.matmul %86, %75, %cst_54 {dimension_numbers = #tpu.dot_dimension_numbers<[1], [0], [0], [1], [0, 0, 1, 1], [], []>} : vector<8x8xf32>, vector<8x8xf32>, vector<8x8xf32> -> vector<8x8xf32>
    %c0_55 = arith.constant 0 : index
    %c16_56 = arith.constant 16 : index
    %99 = vector.load %arg9[%c0_55, %c16_56] : memref<8x32xf32, #tpu.memory_space<vmem>>, vector<8x8xf32>
    %100 = vector.broadcast %83 : vector<8x1xf32> to vector<8x8xf32>
    %101 = arith.mulf %100, %99 : vector<8x8xf32>
    %102 = arith.addf %101, %98 : vector<8x8xf32>
    %c0_57 = arith.constant 0 : index
    %c16_58 = arith.constant 16 : index
    %103 = vector.load %arg9[%c0_57, %c16_58] : memref<8x32xf32, #tpu.memory_space<vmem>>, vector<8x8xf32>
    tpu.vector_store %arg9[%c0_57, %c16_58], %102 {strides = array<i32>} : memref<8x32xf32, #tpu.memory_space<vmem>>, vector<8x8xf32>,
    %104 = vector.extract_strided_slice %6 {offsets = [0, 24], sizes = [8, 8], strides = [1, 1]} : vector<8x32xf32> to vector<8x8xf32>
    %105 = vector.extract_strided_slice %8 {offsets = [0, 24], sizes = [8, 8], strides = [1, 1]} : vector<8x32xf32> to vector<8x8xf32>
    %106 = vector.extract_strided_slice %10 {offsets = [0, 24], sizes = [8, 8], strides = [1, 1]} : vector<8x32xf32> to vector<8x8xf32>
    %cst_59 = arith.constant dense<0.000000e+00> : vector<8x8xf32>
    %107 = tpu.matmul %104, %105, %cst_59 {dimension_numbers = #tpu.dot_dimension_numbers<[1], [1], [0], [0], [0, 0, 1, 0], [], []>} : vector<8x8xf32>, vector<8x8xf32>, vector<8x8xf32> -> vector<8x8xf32>
    %c3 = arith.constant 3 : index
    %c0_60 = arith.constant 0 : index
    %c0_61 = arith.constant 0 : index
    %108 = vector.load %arg7[%c3, %c0_60, %c0_61] : memref<4x8x1xf32, #tpu.memory_space<vmem>>, vector<1x8x1xf32>
    %109 = vector.shape_cast %108 : vector<1x8x1xf32> to vector<8x1xf32>
    %cst_62 = arith.constant dense<0xFF800000> : vector<8xf32>
    %110 = vector.multi_reduction <maximumf>, %107, %cst_62 [1] : vector<8x8xf32> to vector<8xf32>
    %111 = vector.shape_cast %110 : vector<8xf32> to vector<8x1xf32>
    %112 = arith.maximumf %109, %111 : vector<8x1xf32>
    %113 = arith.subf %109, %112 : vector<8x1xf32>
    %114 = math.exp %113 : vector<8x1xf32>
    %115 = vector.broadcast %112 : vector<8x1xf32> to vector<8x8xf32>
    %116 = arith.subf %107, %115 : vector<8x8xf32>
    %117 = math.exp %116 : vector<8x8xf32>
    %c3_63 = arith.constant 3 : index
    %c0_64 = arith.constant 0 : index
    %c0_65 = arith.constant 0 : index
    %118 = vector.load %arg7[%c3_63, %c0_64, %c0_65] : memref<4x8x1xf32, #tpu.memory_space<vmem>>, vector<1x8x1xf32>
    %119 = vector.shape_cast %118 : vector<1x8x1xf32> to vector<8x1xf32>
    %120 = vector.shape_cast %112 : vector<8x1xf32> to vector<1x8x1xf32>
    tpu.vector_store %arg7[%c3_63, %c0_64, %c0_65], %120 {strides = array<i32>} : memref<4x8x1xf32, #tpu.memory_space<vmem>>, vector<1x8x1xf32>,
    %c0_66 = arith.constant 0 : index
    %c24 = arith.constant 24 : index
    %121 = vector.load %arg8[%c0_66, %c24] : memref<8x32xf32, #tpu.memory_space<vmem>>, vector<8x8xf32>
    %122 = vector.broadcast %114 : vector<8x1xf32> to vector<8x8xf32>
    %123 = arith.mulf %122, %121 : vector<8x8xf32>
    %cst_67 = arith.constant dense<0.000000e+00> : vector<8xf32>
    %124 = vector.multi_reduction <add>, %117, %cst_67 [1] : vector<8x8xf32> to vector<8xf32>
    %125 = vector.shape_cast %124 : vector<8xf32> to vector<8x1xf32>
    %126 = vector.broadcast %125 : vector<8x1xf32> to vector<8x8xf32>
    %127 = arith.addf %123, %126 : vector<8x8xf32>
    %c0_68 = arith.constant 0 : index
    %c24_69 = arith.constant 24 : index
    %128 = vector.load %arg8[%c0_68, %c24_69] : memref<8x32xf32, #tpu.memory_space<vmem>>, vector<8x8xf32>
    tpu.vector_store %arg8[%c0_68, %c24_69], %127 {strides = array<i32>} : memref<8x32xf32, #tpu.memory_space<vmem>>, vector<8x8xf32>,
    %cst_70 = arith.constant dense<0.000000e+00> : vector<8x8xf32>
    %129 = tpu.matmul %117, %106, %cst_70 {dimension_numbers = #tpu.dot_dimension_numbers<[1], [0], [0], [1], [0, 0, 1, 1], [], []>} : vector<8x8xf32>, vector<8x8xf32>, vector<8x8xf32> -> vector<8x8xf32>
    %c0_71 = arith.constant 0 : index
    %c24_72 = arith.constant 24 : index
    %130 = vector.load %arg9[%c0_71, %c24_72] : memref<8x32xf32, #tpu.memory_space<vmem>>, vector<8x8xf32>
    %131 = vector.broadcast %114 : vector<8x1xf32> to vector<8x8xf32>
    %132 = arith.mulf %131, %130 : vector<8x8xf32>
    %133 = arith.addf %132, %129 : vector<8x8xf32>
    %c0_73 = arith.constant 0 : index
    %c24_74 = arith.constant 24 : index
    %134 = vector.load %arg9[%c0_73, %c24_74] : memref<8x32xf32, #tpu.memory_space<vmem>>, vector<8x8xf32>
    tpu.vector_store %arg9[%c0_73, %c24_74], %133 {strides = array<i32>} : memref<8x32xf32, #tpu.memory_space<vmem>>, vector<8x8xf32>,
    %c0_i32_75 = arith.constant 0 : i32
    %135 = arith.cmpi eq, %arg2, %c0_i32_75 : i32
    %136 = arith.extui %135 : i1 to i32
    %c0_i32_76 = arith.constant 0 : i32
    %137 = arith.cmpi ne, %136, %c0_i32_76 : i32
    scf.if %137 {
      %c0_77 = arith.constant 0 : index
      %c0_78 = arith.constant 0 : index
      %138 = vector.load %arg8[%c0_77, %c0_78] : memref<8x32xf32, #tpu.memory_space<vmem>>, vector<8x32xf32>
      %139 = tpu.reciprocal %138 {approx = true} : vector<8x32xf32> -> vector<8x32xf32>
      %c0_79 = arith.constant 0 : index
      %c0_80 = arith.constant 0 : index
      %140 = vector.load %arg9[%c0_79, %c0_80] : memref<8x32xf32, #tpu.memory_space<vmem>>, vector<8x32xf32>
      %141 = arith.mulf %140, %139 : vector<8x32xf32>
      %c0_81 = arith.constant 0 : index
      %c0_82 = arith.constant 0 : index
      %c0_83 = arith.constant 0 : index
      %142 = vector.load %arg6[%c0_81, %c0_82, %c0_83] : memref<1x8x32xf32, #tpu.memory_space<vmem>>, vector<1x8x32xf32>
      %143 = vector.shape_cast %142 : vector<1x8x32xf32> to vector<8x32xf32>
      %144 = vector.shape_cast %141 : vector<8x32xf32> to vector<1x8x32xf32>
      tpu.vector_store %arg6[%c0_81, %c0_82, %c0_83], %144 {strides = array<i32>} : memref<1x8x32xf32, #tpu.memory_space<vmem>>, vector<1x8x32xf32>,
    } else {
    }
    return
  }
  func.func @transform_0(%arg0: i32, %arg1: i32, %arg2: i32) -> (i32, i32, i32) {
    %c0_i32 = arith.constant 0 : i32
    %c0_i32_0 = arith.constant 0 : i32
    return %arg0, %arg1, %c0_i32 : i32, i32, i32
  }
  func.func @transform_1(%arg0: i32, %arg1: i32, %arg2: i32) -> (i32, i32, i32) {
    %c0_i32 = arith.constant 0 : i32
    %c0_i32_0 = arith.constant 0 : i32
    return %arg0, %arg2, %c0_i32 : i32, i32, i32
  }
  func.func @transform_2(%arg0: i32, %arg1: i32, %arg2: i32) -> (i32, i32, i32) {
    %c0_i32 = arith.constant 0 : i32
    %c0_i32_0 = arith.constant 0 : i32
    return %arg0, %arg2, %c0_i32 : i32, i32, i32
  }
  func.func @transform_3(%arg0: i32, %arg1: i32, %arg2: i32) -> (i32, i32, i32) {
    %c0_i32 = arith.constant 0 : i32
    %c0_i32_0 = arith.constant 0 : i32
    return %arg0, %arg1, %c0_i32 : i32, i32, i32
  }
}

</mosaic_0001>

<llo_original>
// kernel: tpu_custom_call.1
$region0: #{tpu_custom_call.1}
  #allocation0 [shape = 'u32[]', space=smem, size = 0x4, offset = 0x4, fixed_abs, tag = 'smem constant byte address 0x4 - core index']
  #allocation1 [shape = 'u32[144,128]{1,0:T(1,128)}', space=vmem, size = 0x12000, scoped, tag = 'internal scratch']
  #allocation2 [shape = 'f32[4,8,1]{2,1,0:T(8,128)}', space=vmem, size = 0x4000, scoped, tag = 'scratch operand']
  #allocation3 [shape = 'f32[8,32]{1,0:T(8,128)}', space=vmem, size = 0x1000, scoped, tag = 'scratch operand']
  #allocation4 [shape = 'f32[8,32]{1,0:T(8,128)}', space=vmem, size = 0x1000, scoped, tag = 'scratch operand']
  %s0 = inlined_call_operand.hbm [shape: f32[2,8,32], index: 0, kind: input, shape index: {}]
  %s1 = inlined_call_operand.hbm [shape: f32[2,8,32], index: 1, kind: input, shape index: {}]
  %s2 = inlined_call_operand.hbm [shape: f32[2,8,32], index: 2, kind: input, shape index: {}]
  %s3 = inlined_call_operand.hbm [shape: f32[2,8,32], index: 3, kind: output, shape index: {}]
  %s4 = sld [smem:[#allocation0]]
  $region65: #{tpu_custom_call.1} parent=0
    _
  %s6 = ssub.s32 1, %s4
  %s7 = scalar_select 0, %s6, %s4
  $region1: #{tpu_custom_call.1} parent=0
    #allocation5 [shape = 'u8[8192]{0}', space=vmem, size = 0x2000, scoped, tag = 'input window, operand 0']
    #allocation6 [shape = 's32[2]{0}', space=sflag, size = 0x8, scoped, tag = 'scoped memory for tpu_custom_call.1']
    #allocation7 [shape = 's32[2]{0}', space=sflag, size = 0x8, scoped, tag = 'scoped memory for tpu_custom_call.1']
    #allocation8 [shape = 'u8[8192]{0}', space=vmem, size = 0x2000, scoped, tag = 'input window, operand 1']
    #allocation9 [shape = 's32[2]{0}', space=sflag, size = 0x8, scoped, tag = 'scoped memory for tpu_custom_call.1']
    #allocation10 [shape = 'u8[8192]{0}', space=vmem, size = 0x2000, scoped, tag = 'input window, operand 2']
    #allocation11 [shape = 'u8[8192]{0}', space=vmem, size = 0x2000, scoped, tag = 'output window, operand 0']
    %8 = vsyncpa [#allocation6], 0
    %s9 = scalar_lea.sflag [#allocation6], 1
    %10 = vsyncpa %s9, 0
    %11 = vsyncpa [#allocation9], 0
    %s12 = scalar_lea.sflag [#allocation9], 1
    %13 = vsyncpa %s12, 0
    %14 = vsyncpa [#allocation7], 0
    %s15 = scalar_lea.sflag [#allocation7], 1
    %16 = vsyncpa %s15, 0
    loop: start=0, step=1, limit=4
    $region2: #{tpu_custom_call.1} parent=1 // loop_pre_header
      _
    $region3: #{tpu_custom_call.1} parent=1 // loop_header
      %s18 = sphi 0, %s22
      %p19 = scmp.ge.s32.totalorder %s18, 4
      %s25 = sphi 0, %s44
      %s26 = sphi 0, %s40
      %s27 = sphi 0, %s36
      %s28 = sphi 0, %s25
      %s29 = sphi 0, %s26
      %s30 = sphi 0, %s27
      %s31 = sphi 0, %s28
      %s32 = sphi 0, %s29
      %s33 = sphi 0, %s30
      %s49 = sphi 0, %s51
      %s52 = sphi 0, %s49
      %s53 = sphi 0, %s52
      %s69 = sphi 0, %s53
      %s77 = sphi 0, %s79
      %s80 = sphi 0, %s77
      %s81 = sphi 0, %s80
      %s97 = sphi 0, %s81
      %s105 = sphi 0, %s107
      %s108 = sphi 0, %s105
      %s109 = sphi 0, %s108
      %s125 = sphi 0, %s109
      %s133 = sphi 0, %s135
      %s136 = sphi 0, %s133
      %s137 = sphi 0, %s136
      %s153 = sphi 0, %s137
    $region4: #{tpu_custom_call.1} parent=1 // loop_header_branch
      %21 = sbr.rel (%p19) target = $region8
    $region5: #{tpu_custom_call.1} parent=1 // loop_body
      %s23 = ssub.s32 %s18, 1
      %s24 = ssub.s32 %s18, 2
      %s34 = sadd.s32 1, %s27
      %p35 = scmp.ge.s32.totalorder %s34, 1
      %s36 = scalar_select %p35, 0, %s34
      %s37 = sadd.s32 1, %s26
      %s38 = scalar_select %p35, %s37, %s26
      %p39 = scmp.ge.s32.totalorder %s38, 1
      %s40 = scalar_select %p39, 0, %s38
      %s41 = sadd.s32 1, %s25
      %s42 = scalar_select %p39, %s41, %s25
      %p43 = scmp.ge.s32.totalorder %s42, 2
      %s44 = scalar_select %p43, 0, %s42
      %s45 = ssub.s32 %s25, %s44
      %s46 = ssub.s32 %s26, %s40
      %s47 = sor.u32 %s45, %s46
      %p48 = scmp.eq.s32.totalorder %s47, 0
      %s50 = sadd.s32 %s49, 1
      %s51 = scalar_select %p48, %s49, %s50
      %p54 = pneg %p48
      %p55 = scmp.eq.s32.totalorder %s18, 1
      %p56 = por %p54, %p55
      %p57 = scmp.ne.s32.totalorder %s49, %s52
      %p58 = scmp.eq.s32.totalorder %s18, 0
      %p59 = por %p57, %p58
      %p60 = scmp.ne.s32.totalorder %s49, %s52
      %p61 = scmp.eq.s32.totalorder %s23, 1
      %p62 = por %p60, %p61
      %p63 = scmp.ne.s32.totalorder %s52, %s53
      %p64 = scmp.eq.s32.totalorder %s23, 0
      %p65 = por %p63, %p64
      %p66 = scmp.ne.s32.totalorder %s52, %s53
      %p67 = scmp.eq.s32.totalorder %s24, 1
      %p68 = por %p66, %p67
      %p70 = scmp.ne.s32.totalorder %s53, %s69
      %p71 = scmp.eq.s32.totalorder %s24, 0
      %p72 = por %p70, %p71
      %s73 = ssub.s32 %s25, %s44
      %s74 = ssub.s32 %s27, %s36
      %s75 = sor.u32 %s73, %s74
      %p76 = scmp.eq.s32.totalorder %s75, 0
      %s78 = sadd.s32 %s77, 1
      %s79 = scalar_select %p76, %s77, %s78
      %p82 = pneg %p76
      %p83 = scmp.eq.s32.totalorder %s18, 1
      %p84 = por %p82, %p83
      %p85 = scmp.ne.s32.totalorder %s77, %s80
      %p86 = scmp.eq.s32.totalorder %s18, 0
      %p87 = por %p85, %p86
      %p88 = scmp.ne.s32.totalorder %s77, %s80
      %p89 = scmp.eq.s32.totalorder %s23, 1
      %p90 = por %p88, %p89
      %p91 = scmp.ne.s32.totalorder %s80, %s81
      %p92 = scmp.eq.s32.totalorder %s23, 0
      %p93 = por %p91, %p92
      %p94 = scmp.ne.s32.totalorder %s80, %s81
      %p95 = scmp.eq.s32.totalorder %s24, 1
      %p96 = por %p94, %p95
      %p98 = scmp.ne.s32.totalorder %s81, %s97
      %p99 = scmp.eq.s32.totalorder %s24, 0
      %p100 = por %p98, %p99
      %s101 = ssub.s32 %s25, %s44
      %s102 = ssub.s32 %s27, %s36
      %s103 = sor.u32 %s101, %s102
      %p104 = scmp.eq.s32.totalorder %s103, 0
      %s106 = sadd.s32 %s105, 1
      %s107 = scalar_select %p104, %s105, %s106
      %p110 = pneg %p104
      %p111 = scmp.eq.s32.totalorder %s18, 1
      %p112 = por %p110, %p111
      %p113 = scmp.ne.s32.totalorder %s105, %s108
      %p114 = scmp.eq.s32.totalorder %s18, 0
      %p115 = por %p113, %p114
      %p116 = scmp.ne.s32.totalorder %s105, %s108
      %p117 = scmp.eq.s32.totalorder %s23, 1
      %p118 = por %p116, %p117
      %p119 = scmp.ne.s32.totalorder %s108, %s109
      %p120 = scmp.eq.s32.totalorder %s23, 0
      %p121 = por %p119, %p120
      %p122 = scmp.ne.s32.totalorder %s108, %s109
      %p123 = scmp.eq.s32.totalorder %s24, 1
      %p124 = por %p122, %p123
      %p126 = scmp.ne.s32.totalorder %s109, %s125
      %p127 = scmp.eq.s32.totalorder %s24, 0
      %p128 = por %p126, %p127
      %s129 = ssub.s32 %s25, %s44
      %s130 = ssub.s32 %s26, %s40
      %s131 = sor.u32 %s129, %s130
      %p132 = scmp.eq.s32.totalorder %s131, 0
      %s134 = sadd.s32 %s133, 1
      %s135 = scalar_select %p132, %s133, %s134
      %p138 = pneg %p132
      %p139 = scmp.eq.s32.totalorder %s18, 1
      %p140 = por %p138, %p139
      %p141 = scmp.ne.s32.totalorder %s133, %s136
      %p142 = scmp.eq.s32.totalorder %s18, 0
      %p143 = por %p141, %p142
      %p144 = scmp.ne.s32.totalorder %s133, %s136
      %p145 = scmp.eq.s32.totalorder %s23, 1
      %p146 = por %p144, %p145
      %p147 = scmp.ne.s32.totalorder %s136, %s137
      %p148 = scmp.eq.s32.totalorder %s23, 0
      %p149 = por %p147, %p148
      %p150 = scmp.ne.s32.totalorder %s136, %s137
      %p151 = scmp.eq.s32.totalorder %s24, 1
      %p152 = por %p150, %p151
      %p154 = scmp.ne.s32.totalorder %s137, %s153
      %p155 = scmp.eq.s32.totalorder %s24, 0
      %p156 = por %p154, %p155
      %p157 = scmp.le.s32.totalorder 1, %s18
      %p158 = scmp.lt.s32.totalorder %s18, 3
      %p159 = pnand %p157, %p158
      %p160 = pneg %p159
      // Predicated region
      $region9: #{tpu_custom_call.1} parent=5 // pred_check
        _
      $region10: #{tpu_custom_call.1} parent=5 // pred_check_branch
        %162 = sbr.rel (%p159) target = $region12
      $region11: #{tpu_custom_call.1} parent=5 // pred_region
        %s163 = ssub.s32 %s18, 1
      $region12: #{tpu_custom_call.1} parent=5 // pred_fallthru
        _
      %p164 = scmp.lt.s32.totalorder %s18, 2
      // Predicated region
      $region13: #{tpu_custom_call.1} parent=5 // pred_check
        %p165 = pneg %p164
      $region14: #{tpu_custom_call.1} parent=5 // pred_check_branch
        %167 = sbr.rel (%p165) target = $region16
      $region15: #{tpu_custom_call.1} parent=5 // pred_region
        // Predicated region
        $region17: #{tpu_custom_call.1} parent=15 // pred_check
          %p168 = pneg %p59
        $region18: #{tpu_custom_call.1} parent=15 // pred_check_branch
          %170 = sbr.rel (%p168) target = $region20
        $region19: #{tpu_custom_call.1} parent=15 // pred_region
          %s171 = sand.u32 %s49, 1
          %s172 = scalar_lea.sflag [#allocation6], %s171
          %s173 = sand.u32 %s49, 1
          %s174 = smul.addr %s173, 8
          %s175 = scalar_lea.vmem [#allocation5], %s174
          %s177 = ssub.s32 128, 128
          %178 = vsyncadd %s172, %s177
          %s179 = sadd.s32 %s26, %s25
          %s180 = smul.addr %s179, 128
          %s181 = scalar_lea.hbm %s0, %s180
          %s183 = sshll.u32 %s175, 4
          %s184 = int_to_ptr.vmem [resolvable:$true] %s183
          %186 = dma.hbm_to_vmem [thread:$0]  %s181, 128, %s184, %s172
        $region20: #{tpu_custom_call.1} parent=15 // pred_fallthru
          _
        // Predicated region
        $region21: #{tpu_custom_call.1} parent=15 // pred_check
          %p187 = pneg %p87
        $region22: #{tpu_custom_call.1} parent=15 // pred_check_branch
          %189 = sbr.rel (%p187) target = $region24
        $region23: #{tpu_custom_call.1} parent=15 // pred_region
          %s190 = sand.u32 %s18, 1
          %s191 = scalar_lea.sflag [#allocation9], %s190
          %s192 = sand.u32 %s77, 1
          %s193 = smul.addr %s192, 8
          %s194 = scalar_lea.vmem [#allocation8], %s193
          %s196 = ssub.s32 128, 128
          %197 = vsyncadd %s191, %s196
          %s198 = sadd.s32 %s27, %s25
          %s199 = smul.addr %s198, 128
          %s200 = scalar_lea.hbm %s1, %s199
          %s202 = sshll.u32 %s194, 4
          %s203 = int_to_ptr.vmem [resolvable:$true] %s202
          %205 = dma.hbm_to_vmem [thread:$0]  %s200, 128, %s203, %s191
        $region24: #{tpu_custom_call.1} parent=15 // pred_fallthru
          _
        // Predicated region
        $region25: #{tpu_custom_call.1} parent=15 // pred_check
          %p206 = pneg %p115
        $region26: #{tpu_custom_call.1} parent=15 // pred_check_branch
          %208 = sbr.rel (%p206) target = $region28
        $region27: #{tpu_custom_call.1} parent=15 // pred_region
          %s209 = sand.u32 %s18, 1
          %s210 = scalar_lea.sflag [#allocation9], %s209
          %s211 = sand.u32 %s105, 1
          %s212 = smul.addr %s211, 8
          %s213 = scalar_lea.vmem [#allocation10], %s212
          %s215 = ssub.s32 128, 128
          %216 = vsyncadd %s210, %s215
          %s217 = sadd.s32 %s27, %s25
          %s218 = smul.addr %s217, 128
          %s219 = scalar_lea.hbm %s2, %s218
          %s221 = sshll.u32 %s213, 4
          %s222 = int_to_ptr.vmem [resolvable:$true] %s221
          %224 = dma.hbm_to_vmem [thread:$0]  %s219, 128, %s222, %s210
        $region28: #{tpu_custom_call.1} parent=15 // pred_fallthru
          _
      $region16: #{tpu_custom_call.1} parent=5 // pred_fallthru
        _
      %p225 = scmp.le.s32.totalorder 1, %s18
      %p226 = scmp.lt.s32.totalorder %s18, 3
      %p227 = pnand %p225, %p226
      %p228 = pneg %p227
      // Predicated region
      $region29: #{tpu_custom_call.1} parent=5 // pred_check
        _
      $region30: #{tpu_custom_call.1} parent=5 // pred_check_branch
        %230 = sbr.rel (%p227) target = $region32
      $region31: #{tpu_custom_call.1} parent=5 // pred_region
        %s231 = ssub.s32 %s18, 1
        %s232 = sand.u32 %s52, 1
        %s233 = scalar_lea.sflag [#allocation6], %s232
        %s234 = sand.u32 %s52, 1
        %s235 = smul.addr %s234, 8
        %s236 = scalar_lea.vmem [#allocation5], %s235
        // Predicated region
        $region33: #{tpu_custom_call.1} parent=31 // pred_check
          %p237 = pneg %p65
        $region34: #{tpu_custom_call.1} parent=31 // pred_check_branch
          %239 = sbr.rel (%p237) target = $region36
        $region35: #{tpu_custom_call.1} parent=31 // pred_region
          %240 = dma.done %s233, 128
        $region36: #{tpu_custom_call.1} parent=31 // pred_fallthru
          _
        %s241 = sand.u32 %s23, 1
        %s242 = scalar_lea.sflag [#allocation9], %s241
        %s243 = sand.u32 %s80, 1
        %s244 = smul.addr %s243, 8
        %s245 = scalar_lea.vmem [#allocation8], %s244
        // Predicated region
        $region37: #{tpu_custom_call.1} parent=31 // pred_check
          %p246 = pneg %p93
        $region38: #{tpu_custom_call.1} parent=31 // pred_check_branch
          %248 = sbr.rel (%p246) target = $region40
        $region39: #{tpu_custom_call.1} parent=31 // pred_region
          %249 = dma.done %s242, 128
        $region40: #{tpu_custom_call.1} parent=31 // pred_fallthru
          _
        %s250 = sand.u32 %s23, 1
        %s251 = scalar_lea.sflag [#allocation9], %s250
        %s252 = sand.u32 %s108, 1
        %s253 = smul.addr %s252, 8
        %s254 = scalar_lea.vmem [#allocation10], %s253
        // Predicated region
        $region41: #{tpu_custom_call.1} parent=31 // pred_check
          %p255 = pneg %p121
        $region42: #{tpu_custom_call.1} parent=31 // pred_check_branch
          %257 = sbr.rel (%p255) target = $region44
        $region43: #{tpu_custom_call.1} parent=31 // pred_region
          %258 = dma.done %s251, 128
        $region44: #{tpu_custom_call.1} parent=31 // pred_fallthru
          _
        %s259 = sand.u32 %s52, 1
        %s260 = scalar_lea.sflag [#allocation6], %s259
        %s261 = sand.u32 %s52, 1
        %s262 = smul.addr %s261, 8
        %s263 = scalar_lea.vmem [#allocation5], %s262
        %p264 = pneg %p65
        %p265 = pneg %p62
        %s266 = sand.u32 %s23, 1
        %s267 = scalar_lea.sflag [#allocation9], %s266
        %s268 = sand.u32 %s80, 1
        %s269 = smul.addr %s268, 8
        %s270 = scalar_lea.vmem [#allocation8], %s269
        %p271 = pneg %p93
        %p272 = pneg %p90
        %s273 = sand.u32 %s23, 1
        %s274 = scalar_lea.sflag [#allocation9], %s273
        %s275 = sand.u32 %s108, 1
        %s276 = smul.addr %s275, 8
        %s277 = scalar_lea.vmem [#allocation10], %s276
        %p278 = pneg %p121
        %p279 = pneg %p118
        %p280 = pneg %p149
        %p281 = pneg %p146
        %s282 = sand.u32 %s136, 1
        %s283 = scalar_lea.sflag [#allocation7], %s282
        %s284 = sand.u32 %s136, 1
        %s285 = smul.addr %s284, 8
        %s286 = scalar_lea.vmem [#allocation11], %s285
        %p287 = scmp.eq.s32.totalorder %s30, 0
        // Predicated region
        $region45: #{tpu_custom_call.1} parent=31 // pred_check
          %p288 = pneg %p287
        $region46: #{tpu_custom_call.1} parent=31 // pred_check_branch
          %290 = sbr.rel (%p288) target = $region48
        $region47: #{tpu_custom_call.1} parent=31 // pred_region
          %vm291 = vcmask 7168
          %292 = vst.msk [vmem:[#allocation2] sm:$0xff] %vm291, -1e+30
          %293 = vst.msk [vmem:[#allocation2 + $0x8] sm:$0xff] %vm291, -1e+30
          %294 = vst.msk [vmem:[#allocation2 + $0x10] sm:$0xff] %vm291, -1e+30
          %295 = vst.msk [vmem:[#allocation2 + $0x18] sm:$0xff] %vm291, -1e+30
          %vm296 = vcmask 261120
          %297 = vst.msk [vmem:[#allocation3] sm:$0xff] %vm296, 0.0
          %298 = vst.msk [vmem:[#allocation4] sm:$0xff] %vm296, 0.0
        $region48: #{tpu_custom_call.1} parent=31 // pred_fallthru
          _
        %v299 = vld [vmem:[%s236] sm:$0xff]
        %v300 = vmul.f32 %v299, 0.35355338
        %v301 = vld [vmem:[%s245] sm:$0xff]
        %v302 = vld [vmem:[%s254] sm:$0xff]
        %vm303 = vcmask 64512
        %v305 = vsel %vm303, %v300, 0
        %v308 = vsel %vm303, %v301, 0
        %310 = vmatprep.subr.mxu0 0.0
        %311 = vmatpush1.xpose.msra.mxu0 0.0
        %312 = vmatprep.subr.mxu0 0.0
        %313 = vmatpush1.xpose.msra.mxu0 0.0
        %314 = vmatprep.subr.mxu0 0.0
        %315 = vmatpush1.xpose.msra.mxu0 0.0
        %316 = vmatprep.subr.mxu0 0.0
        %317 = vmatpush1.xpose.msra.mxu0 0.0
        %318 = vmatprep.subr.mxu0 0.0
        %319 = vmatpush1.xpose.msra.mxu0 0.0
        %320 = vmatprep.subr.mxu0 0.0
        %321 = vmatpush1.xpose.msra.mxu0 0.0
        %322 = vmatprep.subr.mxu0 0.0
        %323 = vmatpush1.xpose.msra.mxu0 0.0
        %324 = vmatprep.subr.mxu0 0.0
        %325 = vmatpush1.xpose.msra.mxu0 0.0
        %326 = vmatprep.subr.mxu0 0.0
        %327 = vmatpush1.xpose.msra.mxu0 0.0
        %328 = vmatprep.subr.mxu0 0.0
        %329 = vmatpush1.xpose.msra.mxu0 0.0
        %330 = vmatprep.subr.mxu0 0.0
        %331 = vmatpush1.xpose.msra.mxu0 0.0
        %332 = vmatprep.subr.mxu0 0.0
        %333 = vmatpush1.xpose.msra.mxu0 0.0
        %334 = vmatprep.subr.mxu0 0.0
        %335 = vmatpush1.xpose.msra.mxu0 0.0
        %336 = vmatprep.subr.mxu0 0.0
        %337 = vmatpush1.xpose.msra.mxu0 0.0
        %338 = vmatprep.subr.mxu0 0.0
        %339 = vmatpush1.xpose.msra.mxu0 0.0
        %340 = vmatprep.subr.mxu0 0.0
        %341 = vmatpush1.xpose.msra.mxu0 %v308
        %342 = vmatprep.subr.mxu0 0.0
        %343 = vmatpush2.xpose.msra.mxu0 0.0
        %344 = vmatprep.subr.mxu0 0.0
        %345 = vmatpush2.xpose.msra.mxu0 0.0
        %346 = vmatprep.subr.mxu0 0.0
        %347 = vmatpush2.xpose.msra.mxu0 0.0
        %348 = vmatprep.subr.mxu0 0.0
        %349 = vmatpush2.xpose.msra.mxu0 0.0
        %350 = vmatprep.subr.mxu0 0.0
        %351 = vmatpush2.xpose.msra.mxu0 0.0
        %352 = vmatprep.subr.mxu0 0.0
        %353 = vmatpush2.xpose.msra.mxu0 0.0
        %354 = vmatprep.subr.mxu0 0.0
        %355 = vmatpush2.xpose.msra.mxu0 0.0
        %356 = vmatprep.subr.mxu0 0.0
        %357 = vmatpush2.xpose.msra.mxu0 0.0
        %358 = vmatprep.subr.mxu0 0.0
        %359 = vmatpush2.xpose.msra.mxu0 0.0
        %360 = vmatprep.subr.mxu0 0.0
        %361 = vmatpush2.xpose.msra.mxu0 0.0
        %362 = vmatprep.subr.mxu0 0.0
        %363 = vmatpush2.xpose.msra.mxu0 0.0
        %364 = vmatprep.subr.mxu0 0.0
        %365 = vmatpush2.xpose.msra.mxu0 0.0
        %366 = vmatprep.subr.mxu0 0.0
        %367 = vmatpush2.xpose.msra.mxu0 0.0
        %368 = vmatprep.subr.mxu0 0.0
        %369 = vmatpush2.xpose.msra.mxu0 0.0
        %370 = vmatprep.subr.mxu0 0.0
        %371 = vmatpush2.xpose.msra.mxu0 0.0
        %372 = vmatprep.subr.mxu0 0.0
        %373 = vmatpush2.xpose.msra.mxu0 0.0
        %374 = vmatprep.mubr.f32.mxu0 0.0
        %375 = vmatmul.mubr.f32.gmra.mxu0 %v305
        %v376 = vpop.f32.mrf.mxu0
        %v377 = vadd.f32 0.0, %v376
        %v378 = vpop.f32.mrf.mxu0
        %379 = vdwg.mxu0
        %v380 = vld [vmem:[#allocation2] sm:$0xff]
        %v381 = vsel %vm303, %v377, -inf
        %382 = vmax.xlane.f32.xlu0 %v381
        %v383 = vpop.xlane.xlu0 %382
        %v384 = vmax.f32 %v380, %v383
        %v385 = vsub.f32 %v380, %v384
        %v386 = vmul.f32 %v385, 1.442695
        %v387 = vpow.pop %v386
        %389 = vset.pattern.permute.xlu0 0
        %390 = vperm.xlu0 %389, %v384
        %v391 = vpop.permute.xlu0 %390
        %v393 = vsub.f32 %v377, %v391
        %v394 = vmul.f32 %v393, 1.442695
        %v395 = vpow.pop %v394
        %vm396 = vcmask 7168
        %397 = vst.msk [vmem:[#allocation2] sm:$0xff] %vm396, %v384
        %v398 = vld [vmem:[#allocation3] sm:$0xff]
        %400 = vset.pattern.permute.xlu0 0
        %401 = vperm.xlu0 %400, %v387
        %v402 = vpop.permute.xlu0 %401
        %v404 = vmul.f32 %v402, %v398
        %v405 = vsel %vm303, %v395, 0.0
        %406 = vadd.xlane.f32.xlu0 %v405
        %v407 = vpop.xlane.xlu0 %406
        %v408 = vadd.f32 %v404, %v407
        %409 = vst.msk [vmem:[#allocation3] sm:$0xff] %vm303, %v408
        %v411 = vsel %vm303, %v395, 0
        %413 = vmatprep.subr.mxu0 0.0
        %414 = vmatpush1.msra.mxu0 0.0
        %415 = vmatprep.subr.mxu0 0.0
        %416 = vmatpush1.msra.mxu0 0.0
        %417 = vmatprep.subr.mxu0 0.0
        %418 = vmatpush1.msra.mxu0 0.0
        %419 = vmatprep.subr.mxu0 0.0
        %420 = vmatpush1.msra.mxu0 0.0
        %421 = vmatprep.subr.mxu0 0.0
        %422 = vmatpush1.msra.mxu0 0.0
        %423 = vmatprep.subr.mxu0 0.0
        %424 = vmatpush1.msra.mxu0 0.0
        %425 = vmatprep.subr.mxu0 0.0
        %426 = vmatpush1.msra.mxu0 0.0
        %427 = vmatprep.subr.mxu0 0.0
        %428 = vmatpush1.msra.mxu0 0.0
        %429 = vmatprep.subr.mxu0 0.0
        %430 = vmatpush1.msra.mxu0 0.0
        %431 = vmatprep.subr.mxu0 0.0
        %432 = vmatpush1.msra.mxu0 0.0
        %433 = vmatprep.subr.mxu0 0.0
        %434 = vmatpush1.msra.mxu0 0.0
        %435 = vmatprep.subr.mxu0 0.0
        %436 = vmatpush1.msra.mxu0 0.0
        %437 = vmatprep.subr.mxu0 0.0
        %438 = vmatpush1.msra.mxu0 0.0
        %439 = vmatprep.subr.mxu0 0.0
        %440 = vmatpush1.msra.mxu0 0.0
        %441 = vmatprep.subr.mxu0 0.0
        %442 = vmatpush1.msra.mxu0 0.0
        %443 = vmatprep.subr.mxu0 0.0
        %444 = vmatpush1.msra.mxu0 %v302
        %445 = vmatprep.subr.mxu0 0.0
        %446 = vmatpush2.msra.mxu0 0.0
        %447 = vmatprep.subr.mxu0 0.0
        %448 = vmatpush2.msra.mxu0 0.0
        %449 = vmatprep.subr.mxu0 0.0
        %450 = vmatpush2.msra.mxu0 0.0
        %451 = vmatprep.subr.mxu0 0.0
        %452 = vmatpush2.msra.mxu0 0.0
        %453 = vmatprep.subr.mxu0 0.0
        %454 = vmatpush2.msra.mxu0 0.0
        %455 = vmatprep.subr.mxu0 0.0
        %456 = vmatpush2.msra.mxu0 0.0
        %457 = vmatprep.subr.mxu0 0.0
        %458 = vmatpush2.msra.mxu0 0.0
        %459 = vmatprep.subr.mxu0 0.0
        %460 = vmatpush2.msra.mxu0 0.0
        %461 = vmatprep.subr.mxu0 0.0
        %462 = vmatpush2.msra.mxu0 0.0
        %463 = vmatprep.subr.mxu0 0.0
        %464 = vmatpush2.msra.mxu0 0.0
        %465 = vmatprep.subr.mxu0 0.0
        %466 = vmatpush2.msra.mxu0 0.0
        %467 = vmatprep.subr.mxu0 0.0
        %468 = vmatpush2.msra.mxu0 0.0
        %469 = vmatprep.subr.mxu0 0.0
        %470 = vmatpush2.msra.mxu0 0.0
        %471 = vmatprep.subr.mxu0 0.0
        %472 = vmatpush2.msra.mxu0 0.0
        %473 = vmatprep.subr.mxu0 0.0
        %474 = vmatpush2.msra.mxu0 0.0
        %475 = vmatprep.subr.mxu0 0.0
        %476 = vmatpush2.msra.mxu0 0.0
        %477 = vmatprep.mubr.f32.mxu0 0.0
        %478 = vmatmul.mubr.f32.gmra.mxu0 %v411
        %v479 = vpop.f32.mrf.mxu0
        %v480 = vadd.f32 0.0, %v479
        %v481 = vpop.f32.mrf.mxu0
        %482 = vdwg.mxu0
        %v483 = vld [vmem:[#allocation4] sm:$0xff]
        %v484 = vmul.f32 %v402, %v483
        %v485 = vadd.f32 %v484, %v480
        %486 = vst.msk [vmem:[#allocation4] sm:$0xff] %vm303, %v485
        %487 = vrot.lane.b32.xlu0 %v300, 120
        %v488 = vpop.permute.xlu0 %487
        %489 = vrot.lane.b32.xlu0 %v301, 120
        %v490 = vpop.permute.xlu0 %489
        %v491 = vsel %vm303, %v488, 0
        %v493 = vsel %vm303, %v490, 0
        %495 = vmatprep.subr.mxu0 0.0
        %496 = vmatpush1.xpose.msra.mxu0 0.0
        %497 = vmatprep.subr.mxu0 0.0
        %498 = vmatpush1.xpose.msra.mxu0 0.0
        %499 = vmatprep.subr.mxu0 0.0
        %500 = vmatpush1.xpose.msra.mxu0 0.0
        %501 = vmatprep.subr.mxu0 0.0
        %502 = vmatpush1.xpose.msra.mxu0 0.0
        %503 = vmatprep.subr.mxu0 0.0
        %504 = vmatpush1.xpose.msra.mxu0 0.0
        %505 = vmatprep.subr.mxu0 0.0
        %506 = vmatpush1.xpose.msra.mxu0 0.0
        %507 = vmatprep.subr.mxu0 0.0
        %508 = vmatpush1.xpose.msra.mxu0 0.0
        %509 = vmatprep.subr.mxu0 0.0
        %510 = vmatpush1.xpose.msra.mxu0 0.0
        %511 = vmatprep.subr.mxu0 0.0
        %512 = vmatpush1.xpose.msra.mxu0 0.0
        %513 = vmatprep.subr.mxu0 0.0
        %514 = vmatpush1.xpose.msra.mxu0 0.0
        %515 = vmatprep.subr.mxu0 0.0
        %516 = vmatpush1.xpose.msra.mxu0 0.0
        %517 = vmatprep.subr.mxu0 0.0
        %518 = vmatpush1.xpose.msra.mxu0 0.0
        %519 = vmatprep.subr.mxu0 0.0
        %520 = vmatpush1.xpose.msra.mxu0 0.0
        %521 = vmatprep.subr.mxu0 0.0
        %522 = vmatpush1.xpose.msra.mxu0 0.0
        %523 = vmatprep.subr.mxu0 0.0
        %524 = vmatpush1.xpose.msra.mxu0 0.0
        %525 = vmatprep.subr.mxu0 0.0
        %526 = vmatpush1.xpose.msra.mxu0 %v493
        %527 = vmatprep.subr.mxu0 0.0
        %528 = vmatpush2.xpose.msra.mxu0 0.0
        %529 = vmatprep.subr.mxu0 0.0
        %530 = vmatpush2.xpose.msra.mxu0 0.0
        %531 = vmatprep.subr.mxu0 0.0
        %532 = vmatpush2.xpose.msra.mxu0 0.0
        %533 = vmatprep.subr.mxu0 0.0
        %534 = vmatpush2.xpose.msra.mxu0 0.0
        %535 = vmatprep.subr.mxu0 0.0
        %536 = vmatpush2.xpose.msra.mxu0 0.0
        %537 = vmatprep.subr.mxu0 0.0
        %538 = vmatpush2.xpose.msra.mxu0 0.0
        %539 = vmatprep.subr.mxu0 0.0
        %540 = vmatpush2.xpose.msra.mxu0 0.0
        %541 = vmatprep.subr.mxu0 0.0
        %542 = vmatpush2.xpose.msra.mxu0 0.0
        %543 = vmatprep.subr.mxu0 0.0
        %544 = vmatpush2.xpose.msra.mxu0 0.0
        %545 = vmatprep.subr.mxu0 0.0
        %546 = vmatpush2.xpose.msra.mxu0 0.0
        %547 = vmatprep.subr.mxu0 0.0
        %548 = vmatpush2.xpose.msra.mxu0 0.0
        %549 = vmatprep.subr.mxu0 0.0
        %550 = vmatpush2.xpose.msra.mxu0 0.0
        %551 = vmatprep.subr.mxu0 0.0
        %552 = vmatpush2.xpose.msra.mxu0 0.0
        %553 = vmatprep.subr.mxu0 0.0
        %554 = vmatpush2.xpose.msra.mxu0 0.0
        %555 = vmatprep.subr.mxu0 0.0
        %556 = vmatpush2.xpose.msra.mxu0 0.0
        %557 = vmatprep.subr.mxu0 0.0
        %558 = vmatpush2.xpose.msra.mxu0 0.0
        %559 = vmatprep.mubr.f32.mxu0 0.0
        %560 = vmatmul.mubr.f32.gmra.mxu0 %v491
        %v561 = vpop.f32.mrf.mxu0
        %v562 = vadd.f32 0.0, %v561
        %v563 = vpop.f32.mrf.mxu0
        %564 = vdwg.mxu0
        %s565 = scalar_lea.vmem [#allocation2], 8
        %v566 = vld [vmem:[%s565] sm:$0xff]
        %v567 = vsel %vm303, %v562, -inf
        %568 = vmax.xlane.f32.xlu0 %v567
        %v569 = vpop.xlane.xlu0 %568
        %v570 = vmax.f32 %v566, %v569
        %v571 = vsub.f32 %v566, %v570
        %v572 = vmul.f32 %v571, 1.442695
        %v573 = vpow.pop %v572
        %575 = vset.pattern.permute.xlu0 0
        %576 = vperm.xlu0 %575, %v570
        %v577 = vpop.permute.xlu0 %576
        %v579 = vsub.f32 %v562, %v577
        %v580 = vmul.f32 %v579, 1.442695
        %v581 = vpow.pop %v580
        %582 = vst.msk [vmem:[%s565] sm:$0xff] %vm396, %v570
        %v583 = vld [vmem:[#allocation3] sm:$0xff]
        %585 = vset.pattern.permute.xlu0 0
        %586 = vperm.xlu0 %585, %v573
        %v587 = vpop.permute.xlu0 %586
        %v589 = vmul.f32 %v587, %v583
        %v590 = vsel %vm303, %v581, 0.0
        %591 = vadd.xlane.f32.xlu0 %v590
        %v592 = vpop.xlane.xlu0 %591
        %v593 = vadd.f32 %v589, %v592
        %vm594 = vcmask 130112
        %595 = vst.msk [vmem:[#allocation3] sm:$0xff] %vm594, %v593
        %597 = vrot.lane.b32.xlu0 %v302, 120
        %v598 = vpop.permute.xlu0 %597
        %v601 = vsel %vm303, %v581, 0
        %603 = vmatprep.subr.mxu0 0.0
        %604 = vmatpush1.msra.mxu0 0.0
        %605 = vmatprep.subr.mxu0 0.0
        %606 = vmatpush1.msra.mxu0 0.0
        %607 = vmatprep.subr.mxu0 0.0
        %608 = vmatpush1.msra.mxu0 0.0
        %609 = vmatprep.subr.mxu0 0.0
        %610 = vmatpush1.msra.mxu0 0.0
        %611 = vmatprep.subr.mxu0 0.0
        %612 = vmatpush1.msra.mxu0 0.0
        %613 = vmatprep.subr.mxu0 0.0
        %614 = vmatpush1.msra.mxu0 0.0
        %615 = vmatprep.subr.mxu0 0.0
        %616 = vmatpush1.msra.mxu0 0.0
        %617 = vmatprep.subr.mxu0 0.0
        %618 = vmatpush1.msra.mxu0 0.0
        %619 = vmatprep.subr.mxu0 0.0
        %620 = vmatpush1.msra.mxu0 0.0
        %621 = vmatprep.subr.mxu0 0.0
        %622 = vmatpush1.msra.mxu0 0.0
        %623 = vmatprep.subr.mxu0 0.0
        %624 = vmatpush1.msra.mxu0 0.0
        %625 = vmatprep.subr.mxu0 0.0
        %626 = vmatpush1.msra.mxu0 0.0
        %627 = vmatprep.subr.mxu0 0.0
        %628 = vmatpush1.msra.mxu0 0.0
        %629 = vmatprep.subr.mxu0 0.0
        %630 = vmatpush1.msra.mxu0 0.0
        %631 = vmatprep.subr.mxu0 0.0
        %632 = vmatpush1.msra.mxu0 0.0
        %633 = vmatprep.subr.mxu0 0.0
        %634 = vmatpush1.msra.mxu0 %v598
        %635 = vmatprep.subr.mxu0 0.0
        %636 = vmatpush2.msra.mxu0 0.0
        %637 = vmatprep.subr.mxu0 0.0
        %638 = vmatpush2.msra.mxu0 0.0
        %639 = vmatprep.subr.mxu0 0.0
        %640 = vmatpush2.msra.mxu0 0.0
        %641 = vmatprep.subr.mxu0 0.0
        %642 = vmatpush2.msra.mxu0 0.0
        %643 = vmatprep.subr.mxu0 0.0
        %644 = vmatpush2.msra.mxu0 0.0
        %645 = vmatprep.subr.mxu0 0.0
        %646 = vmatpush2.msra.mxu0 0.0
        %647 = vmatprep.subr.mxu0 0.0
        %648 = vmatpush2.msra.mxu0 0.0
        %649 = vmatprep.subr.mxu0 0.0
        %650 = vmatpush2.msra.mxu0 0.0
        %651 = vmatprep.subr.mxu0 0.0
        %652 = vmatpush2.msra.mxu0 0.0
        %653 = vmatprep.subr.mxu0 0.0
        %654 = vmatpush2.msra.mxu0 0.0
        %655 = vmatprep.subr.mxu0 0.0
        %656 = vmatpush2.msra.mxu0 0.0
        %657 = vmatprep.subr.mxu0 0.0
        %658 = vmatpush2.msra.mxu0 0.0
        %659 = vmatprep.subr.mxu0 0.0
        %660 = vmatpush2.msra.mxu0 0.0
        %661 = vmatprep.subr.mxu0 0.0
        %662 = vmatpush2.msra.mxu0 0.0
        %663 = vmatprep.subr.mxu0 0.0
        %664 = vmatpush2.msra.mxu0 0.0
        %665 = vmatprep.subr.mxu0 0.0
        %666 = vmatpush2.msra.mxu0 0.0
        %667 = vmatprep.mubr.f32.mxu0 0.0
        %668 = vmatmul.mubr.f32.gmra.mxu0 %v601
        %v669 = vpop.f32.mrf.mxu0
        %v670 = vadd.f32 0.0, %v669
        %v671 = vpop.f32.mrf.mxu0
        %672 = vdwg.mxu0
        %v673 = vld [vmem:[#allocation4] sm:$0xff]
        %v674 = vmul.f32 %v587, %v673
        %676 = vrot.lane.b32.xlu0 %v670, 8
        %v677 = vpop.permute.xlu0 %676
        %v679 = vadd.f32 %v674, %v677
        %680 = vst.msk [vmem:[#allocation4] sm:$0xff] %vm594, %v679
        %681 = vrot.lane.b32.xlu0 %v300, 112
        %v682 = vpop.permute.xlu0 %681
        %683 = vrot.lane.b32.xlu0 %v301, 112
        %v684 = vpop.permute.xlu0 %683
        %v685 = vsel %vm303, %v682, 0
        %v687 = vsel %vm303, %v684, 0
        %689 = vmatprep.subr.mxu0 0.0
        %690 = vmatpush1.xpose.msra.mxu0 0.0
        %691 = vmatprep.subr.mxu0 0.0
        %692 = vmatpush1.xpose.msra.mxu0 0.0
        %693 = vmatprep.subr.mxu0 0.0
        %694 = vmatpush1.xpose.msra.mxu0 0.0
        %695 = vmatprep.subr.mxu0 0.0
        %696 = vmatpush1.xpose.msra.mxu0 0.0
        %697 = vmatprep.subr.mxu0 0.0
        %698 = vmatpush1.xpose.msra.mxu0 0.0
        %699 = vmatprep.subr.mxu0 0.0
        %700 = vmatpush1.xpose.msra.mxu0 0.0
        %701 = vmatprep.subr.mxu0 0.0
        %702 = vmatpush1.xpose.msra.mxu0 0.0
        %703 = vmatprep.subr.mxu0 0.0
        %704 = vmatpush1.xpose.msra.mxu0 0.0
        %705 = vmatprep.subr.mxu0 0.0
        %706 = vmatpush1.xpose.msra.mxu0 0.0
        %707 = vmatprep.subr.mxu0 0.0
        %708 = vmatpush1.xpose.msra.mxu0 0.0
        %709 = vmatprep.subr.mxu0 0.0
        %710 = vmatpush1.xpose.msra.mxu0 0.0
        %711 = vmatprep.subr.mxu0 0.0
        %712 = vmatpush1.xpose.msra.mxu0 0.0
        %713 = vmatprep.subr.mxu0 0.0
        %714 = vmatpush1.xpose.msra.mxu0 0.0
        %715 = vmatprep.subr.mxu0 0.0
        %716 = vmatpush1.xpose.msra.mxu0 0.0
        %717 = vmatprep.subr.mxu0 0.0
        %718 = vmatpush1.xpose.msra.mxu0 0.0
        %719 = vmatprep.subr.mxu0 0.0
        %720 = vmatpush1.xpose.msra.mxu0 %v687
        %721 = vmatprep.subr.mxu0 0.0
        %722 = vmatpush2.xpose.msra.mxu0 0.0
        %723 = vmatprep.subr.mxu0 0.0
        %724 = vmatpush2.xpose.msra.mxu0 0.0
        %725 = vmatprep.subr.mxu0 0.0
        %726 = vmatpush2.xpose.msra.mxu0 0.0
        %727 = vmatprep.subr.mxu0 0.0
        %728 = vmatpush2.xpose.msra.mxu0 0.0
        %729 = vmatprep.subr.mxu0 0.0
        %730 = vmatpush2.xpose.msra.mxu0 0.0
        %731 = vmatprep.subr.mxu0 0.0
        %732 = vmatpush2.xpose.msra.mxu0 0.0
        %733 = vmatprep.subr.mxu0 0.0
        %734 = vmatpush2.xpose.msra.mxu0 0.0
        %735 = vmatprep.subr.mxu0 0.0
        %736 = vmatpush2.xpose.msra.mxu0 0.0
        %737 = vmatprep.subr.mxu0 0.0
        %738 = vmatpush2.xpose.msra.mxu0 0.0
        %739 = vmatprep.subr.mxu0 0.0
        %740 = vmatpush2.xpose.msra.mxu0 0.0
        %741 = vmatprep.subr.mxu0 0.0
        %742 = vmatpush2.xpose.msra.mxu0 0.0
        %743 = vmatprep.subr.mxu0 0.0
        %744 = vmatpush2.xpose.msra.mxu0 0.0
        %745 = vmatprep.subr.mxu0 0.0
        %746 = vmatpush2.xpose.msra.mxu0 0.0
        %747 = vmatprep.subr.mxu0 0.0
        %748 = vmatpush2.xpose.msra.mxu0 0.0
        %749 = vmatprep.subr.mxu0 0.0
        %750 = vmatpush2.xpose.msra.mxu0 0.0
        %751 = vmatprep.subr.mxu0 0.0
        %752 = vmatpush2.xpose.msra.mxu0 0.0
        %753 = vmatprep.mubr.f32.mxu0 0.0
        %754 = vmatmul.mubr.f32.gmra.mxu0 %v685
        %v755 = vpop.f32.mrf.mxu0
        %v756 = vadd.f32 0.0, %v755
        %v757 = vpop.f32.mrf.mxu0
        %758 = vdwg.mxu0
        %s759 = scalar_lea.vmem [#allocation2], 16
        %v760 = vld [vmem:[%s759] sm:$0xff]
        %v761 = vsel %vm303, %v756, -inf
        %762 = vmax.xlane.f32.xlu0 %v761
        %v763 = vpop.xlane.xlu0 %762
        %v764 = vmax.f32 %v760, %v763
        %v765 = vsub.f32 %v760, %v764
        %v766 = vmul.f32 %v765, 1.442695
        %v767 = vpow.pop %v766
        %769 = vset.pattern.permute.xlu0 0
        %770 = vperm.xlu0 %769, %v764
        %v771 = vpop.permute.xlu0 %770
        %v773 = vsub.f32 %v756, %v771
        %v774 = vmul.f32 %v773, 1.442695
        %v775 = vpow.pop %v774
        %776 = vst.msk [vmem:[%s759] sm:$0xff] %vm396, %v764
        %v777 = vld [vmem:[#allocation3] sm:$0xff]
        %779 = vset.pattern.permute.xlu0 0
        %780 = vperm.xlu0 %779, %v767
        %v781 = vpop.permute.xlu0 %780
        %v783 = vmul.f32 %v781, %v777
        %v784 = vsel %vm303, %v775, 0.0
        %785 = vadd.xlane.f32.xlu0 %v784
        %v786 = vpop.xlane.xlu0 %785
        %v787 = vadd.f32 %v783, %v786
        %vm788 = vcmask 195712
        %789 = vst.msk [vmem:[#allocation3] sm:$0xff] %vm788, %v787
        %790 = vrot.lane.b32.xlu0 %v302, 112
        %v791 = vpop.permute.xlu0 %790
        %v794 = vsel %vm303, %v775, 0
        %796 = vmatprep.subr.mxu0 0.0
        %797 = vmatpush1.msra.mxu0 0.0
        %798 = vmatprep.subr.mxu0 0.0
        %799 = vmatpush1.msra.mxu0 0.0
        %800 = vmatprep.subr.mxu0 0.0
        %801 = vmatpush1.msra.mxu0 0.0
        %802 = vmatprep.subr.mxu0 0.0
        %803 = vmatpush1.msra.mxu0 0.0
        %804 = vmatprep.subr.mxu0 0.0
        %805 = vmatpush1.msra.mxu0 0.0
        %806 = vmatprep.subr.mxu0 0.0
        %807 = vmatpush1.msra.mxu0 0.0
        %808 = vmatprep.subr.mxu0 0.0
        %809 = vmatpush1.msra.mxu0 0.0
        %810 = vmatprep.subr.mxu0 0.0
        %811 = vmatpush1.msra.mxu0 0.0
        %812 = vmatprep.subr.mxu0 0.0
        %813 = vmatpush1.msra.mxu0 0.0
        %814 = vmatprep.subr.mxu0 0.0
        %815 = vmatpush1.msra.mxu0 0.0
        %816 = vmatprep.subr.mxu0 0.0
        %817 = vmatpush1.msra.mxu0 0.0
        %818 = vmatprep.subr.mxu0 0.0
        %819 = vmatpush1.msra.mxu0 0.0
        %820 = vmatprep.subr.mxu0 0.0
        %821 = vmatpush1.msra.mxu0 0.0
        %822 = vmatprep.subr.mxu0 0.0
        %823 = vmatpush1.msra.mxu0 0.0
        %824 = vmatprep.subr.mxu0 0.0
        %825 = vmatpush1.msra.mxu0 0.0
        %826 = vmatprep.subr.mxu0 0.0
        %827 = vmatpush1.msra.mxu0 %v791
        %828 = vmatprep.subr.mxu0 0.0
        %829 = vmatpush2.msra.mxu0 0.0
        %830 = vmatprep.subr.mxu0 0.0
        %831 = vmatpush2.msra.mxu0 0.0
        %832 = vmatprep.subr.mxu0 0.0
        %833 = vmatpush2.msra.mxu0 0.0
        %834 = vmatprep.subr.mxu0 0.0
        %835 = vmatpush2.msra.mxu0 0.0
        %836 = vmatprep.subr.mxu0 0.0
        %837 = vmatpush2.msra.mxu0 0.0
        %838 = vmatprep.subr.mxu0 0.0
        %839 = vmatpush2.msra.mxu0 0.0
        %840 = vmatprep.subr.mxu0 0.0
        %841 = vmatpush2.msra.mxu0 0.0
        %842 = vmatprep.subr.mxu0 0.0
        %843 = vmatpush2.msra.mxu0 0.0
        %844 = vmatprep.subr.mxu0 0.0
        %845 = vmatpush2.msra.mxu0 0.0
        %846 = vmatprep.subr.mxu0 0.0
        %847 = vmatpush2.msra.mxu0 0.0
        %848 = vmatprep.subr.mxu0 0.0
        %849 = vmatpush2.msra.mxu0 0.0
        %850 = vmatprep.subr.mxu0 0.0
        %851 = vmatpush2.msra.mxu0 0.0
        %852 = vmatprep.subr.mxu0 0.0
        %853 = vmatpush2.msra.mxu0 0.0
        %854 = vmatprep.subr.mxu0 0.0
        %855 = vmatpush2.msra.mxu0 0.0
        %856 = vmatprep.subr.mxu0 0.0
        %857 = vmatpush2.msra.mxu0 0.0
        %858 = vmatprep.subr.mxu0 0.0
        %859 = vmatpush2.msra.mxu0 0.0
        %860 = vmatprep.mubr.f32.mxu0 0.0
        %861 = vmatmul.mubr.f32.gmra.mxu0 %v794
        %v862 = vpop.f32.mrf.mxu0
        %v863 = vadd.f32 0.0, %v862
        %v864 = vpop.f32.mrf.mxu0
        %865 = vdwg.mxu0
        %v866 = vld [vmem:[#allocation4] sm:$0xff]
        %v867 = vmul.f32 %v781, %v866
        %869 = vrot.lane.b32.xlu0 %v863, 16
        %v870 = vpop.permute.xlu0 %869
        %v872 = vadd.f32 %v867, %v870
        %873 = vst.msk [vmem:[#allocation4] sm:$0xff] %vm788, %v872
        %874 = vrot.lane.b32.xlu0 %v300, 104
        %v875 = vpop.permute.xlu0 %874
        %876 = vrot.lane.b32.xlu0 %v301, 104
        %v877 = vpop.permute.xlu0 %876
        %v878 = vsel %vm303, %v875, 0
        %v880 = vsel %vm303, %v877, 0
        %882 = vmatprep.subr.mxu0 0.0
        %883 = vmatpush1.xpose.msra.mxu0 0.0
        %884 = vmatprep.subr.mxu0 0.0
        %885 = vmatpush1.xpose.msra.mxu0 0.0
        %886 = vmatprep.subr.mxu0 0.0
        %887 = vmatpush1.xpose.msra.mxu0 0.0
        %888 = vmatprep.subr.mxu0 0.0
        %889 = vmatpush1.xpose.msra.mxu0 0.0
        %890 = vmatprep.subr.mxu0 0.0
        %891 = vmatpush1.xpose.msra.mxu0 0.0
        %892 = vmatprep.subr.mxu0 0.0
        %893 = vmatpush1.xpose.msra.mxu0 0.0
        %894 = vmatprep.subr.mxu0 0.0
        %895 = vmatpush1.xpose.msra.mxu0 0.0
        %896 = vmatprep.subr.mxu0 0.0
        %897 = vmatpush1.xpose.msra.mxu0 0.0
        %898 = vmatprep.subr.mxu0 0.0
        %899 = vmatpush1.xpose.msra.mxu0 0.0
        %900 = vmatprep.subr.mxu0 0.0
        %901 = vmatpush1.xpose.msra.mxu0 0.0
        %902 = vmatprep.subr.mxu0 0.0
        %903 = vmatpush1.xpose.msra.mxu0 0.0
        %904 = vmatprep.subr.mxu0 0.0
        %905 = vmatpush1.xpose.msra.mxu0 0.0
        %906 = vmatprep.subr.mxu0 0.0
        %907 = vmatpush1.xpose.msra.mxu0 0.0
        %908 = vmatprep.subr.mxu0 0.0
        %909 = vmatpush1.xpose.msra.mxu0 0.0
        %910 = vmatprep.subr.mxu0 0.0
        %911 = vmatpush1.xpose.msra.mxu0 0.0
        %912 = vmatprep.subr.mxu0 0.0
        %913 = vmatpush1.xpose.msra.mxu0 %v880
        %914 = vmatprep.subr.mxu0 0.0
        %915 = vmatpush2.xpose.msra.mxu0 0.0
        %916 = vmatprep.subr.mxu0 0.0
        %917 = vmatpush2.xpose.msra.mxu0 0.0
        %918 = vmatprep.subr.mxu0 0.0
        %919 = vmatpush2.xpose.msra.mxu0 0.0
        %920 = vmatprep.subr.mxu0 0.0
        %921 = vmatpush2.xpose.msra.mxu0 0.0
        %922 = vmatprep.subr.mxu0 0.0
        %923 = vmatpush2.xpose.msra.mxu0 0.0
        %924 = vmatprep.subr.mxu0 0.0
        %925 = vmatpush2.xpose.msra.mxu0 0.0
        %926 = vmatprep.subr.mxu0 0.0
        %927 = vmatpush2.xpose.msra.mxu0 0.0
        %928 = vmatprep.subr.mxu0 0.0
        %929 = vmatpush2.xpose.msra.mxu0 0.0
        %930 = vmatprep.subr.mxu0 0.0
        %931 = vmatpush2.xpose.msra.mxu0 0.0
        %932 = vmatprep.subr.mxu0 0.0
        %933 = vmatpush2.xpose.msra.mxu0 0.0
        %934 = vmatprep.subr.mxu0 0.0
        %935 = vmatpush2.xpose.msra.mxu0 0.0
        %936 = vmatprep.subr.mxu0 0.0
        %937 = vmatpush2.xpose.msra.mxu0 0.0
        %938 = vmatprep.subr.mxu0 0.0
        %939 = vmatpush2.xpose.msra.mxu0 0.0
        %940 = vmatprep.subr.mxu0 0.0
        %941 = vmatpush2.xpose.msra.mxu0 0.0
        %942 = vmatprep.subr.mxu0 0.0
        %943 = vmatpush2.xpose.msra.mxu0 0.0
        %944 = vmatprep.subr.mxu0 0.0
        %945 = vmatpush2.xpose.msra.mxu0 0.0
        %946 = vmatprep.mubr.f32.mxu0 0.0
        %947 = vmatmul.mubr.f32.gmra.mxu0 %v878
        %v948 = vpop.f32.mrf.mxu0
        %v949 = vadd.f32 0.0, %v948
        %v950 = vpop.f32.mrf.mxu0
        %951 = vdwg.mxu0
        %s952 = scalar_lea.vmem [#allocation2], 24
        %v953 = vld [vmem:[%s952] sm:$0xff]
        %v954 = vsel %vm303, %v949, -inf
        %955 = vmax.xlane.f32.xlu0 %v954
        %v956 = vpop.xlane.xlu0 %955
        %v957 = vmax.f32 %v953, %v956
        %v958 = vsub.f32 %v953, %v957
        %v959 = vmul.f32 %v958, 1.442695
        %v960 = vpow.pop %v959
        %962 = vset.pattern.permute.xlu0 0
        %963 = vperm.xlu0 %962, %v957
        %v964 = vpop.permute.xlu0 %963
        %v966 = vsub.f32 %v949, %v964
        %v967 = vmul.f32 %v966, 1.442695
        %v968 = vpow.pop %v967
        %969 = vst.msk [vmem:[%s952] sm:$0xff] %vm396, %v957
        %v970 = vld [vmem:[#allocation3] sm:$0xff]
        %972 = vset.pattern.permute.xlu0 0
        %973 = vperm.xlu0 %972, %v960
        %v974 = vpop.permute.xlu0 %973
        %v976 = vmul.f32 %v974, %v970
        %v977 = vsel %vm303, %v968, 0.0
        %978 = vadd.xlane.f32.xlu0 %v977
        %v979 = vpop.xlane.xlu0 %978
        %v980 = vadd.f32 %v976, %v979
        %vm981 = vcmask 261312
        %982 = vst.msk [vmem:[#allocation3] sm:$0xff] %vm981, %v980
        %983 = vrot.lane.b32.xlu0 %v302, 104
        %v984 = vpop.permute.xlu0 %983
        %v987 = vsel %vm303, %v968, 0
        %989 = vmatprep.subr.mxu0 0.0
        %990 = vmatpush1.msra.mxu0 0.0
        %991 = vmatprep.subr.mxu0 0.0
        %992 = vmatpush1.msra.mxu0 0.0
        %993 = vmatprep.subr.mxu0 0.0
        %994 = vmatpush1.msra.mxu0 0.0
        %995 = vmatprep.subr.mxu0 0.0
        %996 = vmatpush1.msra.mxu0 0.0
        %997 = vmatprep.subr.mxu0 0.0
        %998 = vmatpush1.msra.mxu0 0.0
        %999 = vmatprep.subr.mxu0 0.0
        %1000 = vmatpush1.msra.mxu0 0.0
        %1001 = vmatprep.subr.mxu0 0.0
        %1002 = vmatpush1.msra.mxu0 0.0
        %1003 = vmatprep.subr.mxu0 0.0
        %1004 = vmatpush1.msra.mxu0 0.0
        %1005 = vmatprep.subr.mxu0 0.0
        %1006 = vmatpush1.msra.mxu0 0.0
        %1007 = vmatprep.subr.mxu0 0.0
        %1008 = vmatpush1.msra.mxu0 0.0
        %1009 = vmatprep.subr.mxu0 0.0
        %1010 = vmatpush1.msra.mxu0 0.0
        %1011 = vmatprep.subr.mxu0 0.0
        %1012 = vmatpush1.msra.mxu0 0.0
        %1013 = vmatprep.subr.mxu0 0.0
        %1014 = vmatpush1.msra.mxu0 0.0
        %1015 = vmatprep.subr.mxu0 0.0
        %1016 = vmatpush1.msra.mxu0 0.0
        %1017 = vmatprep.subr.mxu0 0.0
        %1018 = vmatpush1.msra.mxu0 0.0
        %1019 = vmatprep.subr.mxu0 0.0
        %1020 = vmatpush1.msra.mxu0 %v984
        %1021 = vmatprep.subr.mxu0 0.0
        %1022 = vmatpush2.msra.mxu0 0.0
        %1023 = vmatprep.subr.mxu0 0.0
        %1024 = vmatpush2.msra.mxu0 0.0
        %1025 = vmatprep.subr.mxu0 0.0
        %1026 = vmatpush2.msra.mxu0 0.0
        %1027 = vmatprep.subr.mxu0 0.0
        %1028 = vmatpush2.msra.mxu0 0.0
        %1029 = vmatprep.subr.mxu0 0.0
        %1030 = vmatpush2.msra.mxu0 0.0
        %1031 = vmatprep.subr.mxu0 0.0
        %1032 = vmatpush2.msra.mxu0 0.0
        %1033 = vmatprep.subr.mxu0 0.0
        %1034 = vmatpush2.msra.mxu0 0.0
        %1035 = vmatprep.subr.mxu0 0.0
        %1036 = vmatpush2.msra.mxu0 0.0
        %1037 = vmatprep.subr.mxu0 0.0
        %1038 = vmatpush2.msra.mxu0 0.0
        %1039 = vmatprep.subr.mxu0 0.0
        %1040 = vmatpush2.msra.mxu0 0.0
        %1041 = vmatprep.subr.mxu0 0.0
        %1042 = vmatpush2.msra.mxu0 0.0
        %1043 = vmatprep.subr.mxu0 0.0
        %1044 = vmatpush2.msra.mxu0 0.0
        %1045 = vmatprep.subr.mxu0 0.0
        %1046 = vmatpush2.msra.mxu0 0.0
        %1047 = vmatprep.subr.mxu0 0.0
        %1048 = vmatpush2.msra.mxu0 0.0
        %1049 = vmatprep.subr.mxu0 0.0
        %1050 = vmatpush2.msra.mxu0 0.0
        %1051 = vmatprep.subr.mxu0 0.0
        %1052 = vmatpush2.msra.mxu0 0.0
        %1053 = vmatprep.mubr.f32.mxu0 0.0
        %1054 = vmatmul.mubr.f32.gmra.mxu0 %v987
        %v1055 = vpop.f32.mrf.mxu0
        %v1056 = vadd.f32 0.0, %v1055
        %v1057 = vpop.f32.mrf.mxu0
        %1058 = vdwg.mxu0
        %v1059 = vld [vmem:[#allocation4] sm:$0xff]
        %v1060 = vmul.f32 %v974, %v1059
        %1062 = vrot.lane.b32.xlu0 %v1056, 24
        %v1063 = vpop.permute.xlu0 %1062
        %v1065 = vadd.f32 %v1060, %v1063
        %1066 = vst.msk [vmem:[#allocation4] sm:$0xff] %vm981, %v1065
        // Predicated region
        $region49: #{tpu_custom_call.1} parent=31 // pred_check
          %p1067 = pneg %p287
        $region50: #{tpu_custom_call.1} parent=31 // pred_check_branch
          %1069 = sbr.rel (%p1067) target = $region52
        $region51: #{tpu_custom_call.1} parent=31 // pred_region
          %v1070 = vld [vmem:[#allocation3] sm:$0xff]
          %v1071 = vrcp.pop %v1070
          %v1072 = vld [vmem:[#allocation4] sm:$0xff]
          %v1073 = vmul.f32 %v1072, %v1071
          %vm1074 = vcmask 261120
          %1075 = vst.msk [vmem:[%s286] sm:$0xff] %vm1074, %v1073
        $region52: #{tpu_custom_call.1} parent=31 // pred_fallthru
          _
        %s1076 = sand.u32 %s136, 1
        %s1077 = scalar_lea.sflag [#allocation7], %s1076
        %s1078 = sand.u32 %s136, 1
        %s1079 = smul.addr %s1078, 8
        %s1080 = scalar_lea.vmem [#allocation11], %s1079
        // Predicated region
        $region53: #{tpu_custom_call.1} parent=31 // pred_check
          %p1081 = pneg %p146
        $region54: #{tpu_custom_call.1} parent=31 // pred_check_branch
          %1083 = sbr.rel (%p1081) target = $region56
        $region55: #{tpu_custom_call.1} parent=31 // pred_region
          %s1085 = ssub.s32 128, 128
          %1086 = vsyncadd %s1077, %s1085
          %s1087 = sadd.s32 %s29, %s28
          %s1088 = smul.addr %s1087, 128
          %s1089 = scalar_lea.hbm %s3, %s1088
          %s1091 = sshll.u32 %s1080, 4
          %s1092 = int_to_ptr.vmem [resolvable:$true] %s1091
          %1094 = dma.vmem_to_hbm [thread:$0]  %s1092, 128, %s1089, %s1077
        $region56: #{tpu_custom_call.1} parent=31 // pred_fallthru
          _
      $region32: #{tpu_custom_call.1} parent=5 // pred_fallthru
        _
      %p1095 = scmp.le.s32.totalorder 2, %s18
      // Predicated region
      $region57: #{tpu_custom_call.1} parent=5 // pred_check
        %p1096 = pneg %p1095
      $region58: #{tpu_custom_call.1} parent=5 // pred_check_branch
        %1098 = sbr.rel (%p1096) target = $region60
      $region59: #{tpu_custom_call.1} parent=5 // pred_region
        %s1099 = ssub.s32 %s18, 2
        // Predicated region
        $region61: #{tpu_custom_call.1} parent=59 // pred_check
          %p1100 = pneg %p152
        $region62: #{tpu_custom_call.1} parent=59 // pred_check_branch
          %1102 = sbr.rel (%p1100) target = $region64
        $region63: #{tpu_custom_call.1} parent=59 // pred_region
          %s1103 = sand.u32 %s137, 1
          %s1104 = scalar_lea.sflag [#allocation7], %s1103
          %s1105 = sand.u32 %s137, 1
          %s1106 = smul.addr %s1105, 8
          %s1107 = scalar_lea.vmem [#allocation11], %s1106
          %1108 = dma.done %s1104, 128
        $region64: #{tpu_custom_call.1} parent=59 // pred_fallthru
          _
      $region60: #{tpu_custom_call.1} parent=5 // pred_fallthru
        _
    $region6: #{tpu_custom_call.1} parent=1 // loop_footer
      %s22 = sadd.s32 1, %s18
    $region7: #{tpu_custom_call.1} parent=1 // loop_footer_branch
      %17 = sbr.rel target = $region3
    $region8: #{tpu_custom_call.1} parent=1 // loop_exit
      _
    %1109 = vsyncpa [#allocation6], 1
    %s1110 = scalar_lea.sflag [#allocation6], 1
    %1111 = vsyncpa %s1110, 1
    %1112 = vsyncpa [#allocation9], 1
    %s1113 = scalar_lea.sflag [#allocation9], 1
    %1114 = vsyncpa %s1113, 1
    %1115 = vsyncpa [#allocation7], 1
    %s1116 = scalar_lea.sflag [#allocation7], 1
    %1117 = vsyncpa %s1116, 1

</llo_original>
